<compile_context>
chip_gen: v7x
topology: tpu7x:2x2x1
jax: 0.10.0
libtpu: 0.0.40
codegen_flags: <defaults>
</compile_context>

<pallas_src>
import functools
import math

import numpy as np
import jax
import jax.numpy as jnp
from jax import lax
from jax.experimental import pallas as pl
from jax.experimental.pallas import tpu as pltpu


def _round_up(x, m):
    return ((x + m - 1) // m) * m


def _sinkhorn_kernel(x_ref, yT_ref, mu_ref, cost_ref, pi_ref, c_ref,
                     *, eps, max_iter, thresh, m_real):
    x = x_ref[...]              # (b, N, D)   f32
    yT = yT_ref[...]            # (b, D, Mp)  f32 (zero columns past m_real)
    mu = mu_ref[:, 0, :]        # (b, N)      f32
    b, n, _ = x.shape
    m_pad = yT.shape[2]

    inv_eps = 1.0 / eps
    NEG = -1e30                 # "minus infinity" that stays NaN-free under arithmetic

    # ---- cost matrix (one time, MXU + EUP):  C_ij = 1 - cos(x_i, y_j) -------
    dots = jnp.einsum('bnd,bdm->bnm', x, yT, preferred_element_type=jnp.float32)
    # Per-row inverse norms via rsqrt instead of a full (b,N,Mp) divide.
    # NOTE: torch's CosineSimilarity clamps the norm *product* at 1e-8; clamping
    # each norm only differs for degenerate near-zero-norm rows.
    inv_xn = lax.rsqrt(jnp.maximum(jnp.sum(x * x, axis=-1), 1e-16))     # (b, N)
    inv_yn = lax.rsqrt(jnp.maximum(jnp.sum(yT * yT, axis=1), 1e-16))    # (b, Mp)

    col = lax.broadcasted_iota(jnp.int32, (1, m_pad), 1)
    col_mask2 = col < m_real                # (1, Mp)   real columns
    col_mask3 = col_mask2[:, None, :]       # (1, 1, Mp)

    # Scaled duals: K = -C/eps, u' = u/eps, v' = v/eps.  Padded columns get
    # K = NEG so exp(...) == 0 there.  C itself is NOT kept live; it is
    # reconstructed in the epilogue as C = -eps * K.
    cosv = dots * inv_xn[:, :, None] * inv_yn[:, None, :]
    K = jnp.where(col_mask3, (cosv - 1.0) * inv_eps, NEG)               # (b, N, Mp)

    log_mu = jnp.log(mu + 1e-8)                                         # (b, N)
    log_nu = jnp.float32(math.log(1.0 / m_real + 1e-8))                 # scalar

    def body(carry):
        it, _, u, v, Mc = carry
        # --- u-update (single full-matrix exp per iteration, max-shifted) ---
        m_row = jnp.max(Mc, axis=-1, keepdims=True)                     # (b, N, 1)
        E = jnp.exp(Mc - m_row)                                         # (b, N, Mp); 0 on pads
        rowsum = jnp.sum(E, axis=-1)                                    # (b, N)
        du = log_mu - (jnp.log(rowsum) + m_row[..., 0])                 # u'_new - u'
        u_new = u + du
        # --- v-update reuses E: exp(Mc_new_ij) = w_i * E_ij, MXU matvec -----
        w = (mu + 1e-8) / rowsum                                        # == exp(m_row + du)
        s = jnp.einsum('bkn,bnm->bkm', w[:, None, :], E,
                       preferred_element_type=jnp.float32)[:, 0, :]     # (b, Mp)
        s = jnp.maximum(s, 1e-38)                                       # underflow guard (tiny eps)
        v_new = jnp.where(col_mask2, log_nu - jnp.log(s) + v, 0.0)
        # Incremental modified-cost update (two broadcast adds, no rebuild).
        Mc = Mc + du[:, :, None] + (v_new - v)[:, None, :]
        # err = mean over batch tile of sum_i |u_new - u|  (real u = eps * u')
        err = (eps / b) * jnp.sum(jnp.abs(du))
        return (it + 1, err, u_new, v_new, Mc)

    def cond(carry):
        it, err = carry[0], carry[1]
        return jnp.logical_and(it < max_iter, err >= thresh)

    init = (jnp.int32(0), jnp.float32(jnp.inf),
            jnp.zeros((b, n), jnp.float32),
            jnp.zeros((b, m_pad), jnp.float32),
            K)
    # Early exit: per-batch-tile convergence test (identical to the reference
    # whenever the tile covers the whole batch).
    _, _, u, v, _ = lax.while_loop(cond, body, init)

    # Epilogue: rebuild once from K (no incremental drift in the outputs).
    Mfin = K + u[:, :, None] + v[:, None, :]
    pi = jnp.exp(Mfin)                      # exactly 0 on padded columns
    C = -eps * K                            # real columns == cost matrix; pads sliced off in wrapper
    cost_ref[...] = jnp.sum(pi * C, axis=1)[:, None, :]
    pi_ref[...] = pi
    c_ref[...] = C


def _pick_batch_tile(batch, n, m_pad, d, vmem_bytes):
    """Largest divisor of `batch` whose working set fits the VMEM budget,
    capped so the grid has length >= 2 whenever batch >= 2 (v7x megacore)."""
    # Per-batch-row live f32 bytes: ~6 copies of (N, M_pad) (K/Mc/E/pi/C/temp)
    # + single-buffered pi/C output blocks + double-buffered x/yT inputs + vectors.
    per_row = 4 * (8 * n * m_pad + 2 * (n * d + d * m_pad) + 8 * (n + m_pad))
    cap = max(1, int(0.45 * vmem_bytes) // max(per_row, 1))
    if batch >= 2:
        cap = min(cap, max(1, batch // 2))
    best = 1
    for t in range(1, min(cap, batch) + 1):
        if batch % t == 0:
            best = t
    return best


def sinkhorn_pallas(x, y, mu, *, eps, max_iter, thresh=1e-5, reduction='none'):
    x = x.astype(jnp.float32)
    y = y.astype(jnp.float32)
    mu = mu.astype(jnp.float32)
    B, N, D = x.shape
    M = y.shape[1]
    M_pad = _round_up(M, 128)                  # lane-dense last dim (unmasked vst)

    if M_pad != M:
        y = jnp.pad(y, ((0, 0), (0, M_pad - M), (0, 0)))
    yT = jnp.transpose(y, (0, 2, 1))           # (B, D, M_pad): no in-kernel transpose
    mu3 = mu[:, None, :]                       # (B, 1, N): batch out of (sublane, lane)

    try:
        vmem_cap = int(getattr(pltpu.get_tpu_info(), "vmem_capacity_bytes", 0)) or (64 << 20)
    except Exception:
        vmem_cap = 64 << 20                    # conservative (v7x per-TC)

    b_tile = _pick_batch_tile(B, N, M_pad, D, vmem_cap)
    grid = (B // b_tile,)

    kernel = functools.partial(_sinkhorn_kernel, eps=float(eps),
                               max_iter=int(max_iter), thresh=float(thresh),
                               m_real=int(M))

    # VMEM budget: I/O blocks (x/yT/mu/cost double-buffered, pi/C single) + temporaries.
    blk = (2 * b_tile * N * D + 2 * b_tile * D * M_pad + 2 * b_tile * N
           + 2 * b_tile * M_pad + 2 * b_tile * N * M_pad)
    tmp = 6 * b_tile * N * M_pad + 6 * b_tile * (N + M_pad)
    est = 4 * (blk + tmp)
    vmem_limit = int(min(max(2 * est, 32 << 20), int(0.9 * vmem_cap)))

    cost_est = pl.CostEstimate(
        flops=int(2 * B * N * M_pad * D + 10 * max_iter * B * N * M_pad),
        transcendentals=int((max_iter + 1) * B * N * M_pad
                            + max_iter * B * (N + M_pad)),
        bytes_accessed=int(4 * (B * N * D + B * D * M_pad + B * N
                                + B * M_pad + 2 * B * N * M_pad)),
    )

    def run(use_buffered):
        extra = dict(pipeline_mode=pl.Buffered(1)) if use_buffered else {}
        def big_spec():
            return pl.BlockSpec((b_tile, N, M_pad), lambda b: (b, 0, 0), **extra)
        return pl.pallas_call(
            kernel,
            grid=grid,
            in_specs=[
                pl.BlockSpec((b_tile, N, D), lambda b: (b, 0, 0)),
                pl.BlockSpec((b_tile, D, M_pad), lambda b: (b, 0, 0)),
                pl.BlockSpec((b_tile, 1, N), lambda b: (b, 0, 0)),
            ],
            out_specs=(
                pl.BlockSpec((b_tile, 1, M_pad), lambda b: (b, 0, 0)),
                big_spec(),
                big_spec(),
            ),
            out_shape=(jax.ShapeDtypeStruct((B, 1, M_pad), jnp.float32),
                       jax.ShapeDtypeStruct((B, N, M_pad), jnp.float32),
                       jax.ShapeDtypeStruct((B, N, M_pad), jnp.float32)),
            compiler_params=pltpu.CompilerParams(
                dimension_semantics=("parallel",),
                vmem_limit_bytes=vmem_limit),
            cost_estimate=cost_est,
        )(x, yT, mu3)

    try:
        cost_p, pi_p, c_p = run(True)
    except Exception:
        # Fallback if pipeline_mode=pl.Buffered isn't supported by this JAX.
        cost_p, pi_p, c_p = run(False)

    cost = cost_p[:, 0, :M]
    pi = pi_p[:, :, :M]
    C = c_p[:, :, :M]
    if reduction == 'mean':
        cost = jnp.mean(cost)
    elif reduction == 'sum':
        cost = jnp.sum(cost)
    return cost, pi, C


def sinkhorn_ref(x, y, mu, eps, max_iter, thresh):
    """Pure-numpy reference replicating the PyTorch module semantics."""
    x = np.asarray(x, np.float32)
    y = np.asarray(y, np.float32)
    mu = np.asarray(mu, np.float32)
    B, N, _ = x.shape
    M = y.shape[1]

    dots = np.einsum('bnd,bmd->bnm', x, y)
    xn = np.sqrt(np.sum(x * x, -1))
    yn = np.sqrt(np.sum(y * y, -1))
    C = 1.0 - dots / np.maximum(xn[:, :, None] * yn[:, None, :], 1e-8)

    nu = np.full((B, M), 1.0 / M, np.float32)
    u = np.zeros((B, N), np.float32)
    v = np.zeros((B, M), np.float32)

    def Mmat(u, v):
        return (-C + u[:, :, None] + v[:, None, :]) / eps

    def lse(a, axis):
        m = np.max(a, axis=axis, keepdims=True)
        return np.log(np.sum(np.exp(a - m), axis=axis)) + np.squeeze(m, axis=axis)

    for _ in range(max_iter):
        u1 = u
        u = eps * (np.log(mu + 1e-8) - lse(Mmat(u, v), -1)) + u
        v = eps * (np.log(nu + 1e-8) - lse(np.swapaxes(Mmat(u, v), -2, -1), -1)) + v
        err = np.abs(u - u1).sum(-1).mean()
        if err < thresh:
            break

    pi = np.exp(Mmat(u, v))
    cost = np.sum(pi * C, axis=-2)
    return cost, pi, C


if __name__ == "__main__":
    B, N, M, D = 2, 8, 8, 32
    eps, max_iter, thresh = 0.1, 50, 1e-6

    key = jax.random.PRNGKey(0)
    kx, ky, km = jax.random.split(key, 3)
    x = jax.random.normal(kx, (B, N, D), dtype=jnp.float32)
    y = jax.random.normal(ky, (B, M, D), dtype=jnp.float32)
    mu_raw = jax.random.uniform(km, (B, N), dtype=jnp.float32) + 0.1
    mu = mu_raw / jnp.sum(mu_raw, axis=-1, keepdims=True)   # a distribution over N

    cost, pi, C = sinkhorn_pallas(x, y, mu, eps=eps, max_iter=max_iter,
                                  thresh=thresh, reduction='none')
    jax.block_until_ready((cost, pi, C))

    cost_r, pi_r, C_r = sinkhorn_ref(x, y, mu, eps, max_iter, thresh)
    np.testing.assert_allclose(np.asarray(C), C_r, rtol=1e-4, atol=1e-4)
    np.testing.assert_allclose(np.asarray(pi), pi_r, rtol=1e-3, atol=1e-3)
    np.testing.assert_allclose(np.asarray(cost), cost_r, rtol=1e-3, atol=1e-3)

    print("KERNEL_OK")
</pallas_src>

<mosaic_0001>
module attributes {stable_mosaic.version = 11 : i64} {
  func.func @_sinkhorn_kernel(%arg0: i32, %arg1: memref<1x8x32xf32, #tpu.memory_space<vmem>>, %arg2: memref<1x32x128xf32, #tpu.memory_space<vmem>>, %arg3: memref<1x1x8xf32, #tpu.memory_space<vmem>>, %arg4: memref<1x1x128xf32, #tpu.memory_space<vmem>>, %arg5: memref<1x8x128xf32, #tpu.memory_space<vmem>>, %arg6: memref<1x8x128xf32, #tpu.memory_space<vmem>>) attributes {dimension_semantics = [#tpu.dimension_semantics<parallel>], iteration_bounds = array<i64: 2>, scalar_prefetch = 0 : i64, scratch_operands = 0 : i64, tpu.core_type = #tpu.core_type<tc>, window_params = [{transform_indices = @transform_0, window_bounds = array<i64: 1, 8, 32>}, {transform_indices = @transform_1, window_bounds = array<i64: 1, 32, 128>}, {transform_indices = @transform_2, window_bounds = array<i64: 1, 1, 8>}, {transform_indices = @transform_3, window_bounds = array<i64: 1, 1, 128>}, {pipeline_mode = #tpu.pipeline_mode<synchronous>, transform_indices = @transform_4, window_bounds = array<i64: 1, 8, 128>}, {pipeline_mode = #tpu.pipeline_mode<synchronous>, transform_indices = @transform_5, window_bounds = array<i64: 1, 8, 128>}]} {
    %c0 = arith.constant 0 : index
    %c0_0 = arith.constant 0 : index
    %c0_1 = arith.constant 0 : index
    %0 = vector.load %arg1[%c0, %c0_0, %c0_1] : memref<1x8x32xf32, #tpu.memory_space<vmem>>, vector<1x8x32xf32>
    %c0_2 = arith.constant 0 : index
    %c0_3 = arith.constant 0 : index
    %c0_4 = arith.constant 0 : index
    %1 = vector.load %arg2[%c0_2, %c0_3, %c0_4] : memref<1x32x128xf32, #tpu.memory_space<vmem>>, vector<1x32x128xf32>
    %c0_5 = arith.constant 0 : index
    %c0_6 = arith.constant 0 : index
    %c0_7 = arith.constant 0 : index
    %2 = vector.load %arg3[%c0_5, %c0_6, %c0_7] : memref<1x1x8xf32, #tpu.memory_space<vmem>>, vector<1x1x8xf32>
    %3 = vector.shape_cast %2 : vector<1x1x8xf32> to vector<1x8xf32>
    "tpu.trace_start"() <{level = 10 : i32, message = "bnd,bdm->bnm"}> : () -> ()
    %cst = arith.constant dense<0.000000e+00> : vector<1x8x128xf32>
    %4 = tpu.matmul %0, %1, %cst {dimension_numbers = #tpu.dot_dimension_numbers<[2], [1], [1], [2], [0, 0, 0, 1, 1, 2], [0], [0]>} : vector<1x8x32xf32>, vector<1x32x128xf32>, vector<1x8x128xf32> -> vector<1x8x128xf32>
    "tpu.trace_stop"() : () -> ()
    %5 = arith.mulf %0, %0 : vector<1x8x32xf32>
    %cst_8 = arith.constant dense<0.000000e+00> : vector<1x8xf32>
    %6 = vector.multi_reduction <add>, %5, %cst_8 [2] : vector<1x8x32xf32> to vector<1x8xf32>
    %cst_9 = arith.constant 1.000000e-16 : f32
    %7 = vector.broadcast %cst_9 : f32 to vector<1x8xf32>
    %8 = arith.maximumf %6, %7 : vector<1x8xf32>
    %9 = math.rsqrt %8 : vector<1x8xf32>
    %10 = arith.mulf %1, %1 : vector<1x32x128xf32>
    %cst_10 = arith.constant dense<0.000000e+00> : vector<1x128xf32>
    %11 = vector.multi_reduction <add>, %10, %cst_10 [1] : vector<1x32x128xf32> to vector<1x128xf32>
    %cst_11 = arith.constant 1.000000e-16 : f32
    %12 = vector.broadcast %cst_11 : f32 to vector<1x128xf32>
    %13 = arith.maximumf %11, %12 : vector<1x128xf32>
    %14 = math.rsqrt %13 : vector<1x128xf32>
    %15 = tpu.iota {dimensions = array<i32: 1>} : vector<1x128xi32>
    %c8_i32 = arith.constant 8 : i32
    %16 = vector.broadcast %c8_i32 : i32 to vector<1x128xi32>
    %17 = arith.cmpi slt, %15, %16 : vector<1x128xi32>
    %18 = vector.shape_cast %17 : vector<1x128xi1> to vector<1x1x128xi1>
    %19 = vector.shape_cast %9 : vector<1x8xf32> to vector<1x8x1xf32>
    %20 = vector.broadcast %19 : vector<1x8x1xf32> to vector<1x8x128xf32>
    %21 = arith.mulf %4, %20 : vector<1x8x128xf32>
    %22 = vector.shape_cast %14 : vector<1x128xf32> to vector<1x1x128xf32>
    %23 = vector.broadcast %22 : vector<1x1x128xf32> to vector<1x8x128xf32>
    %24 = arith.mulf %21, %23 : vector<1x8x128xf32>
    %cst_12 = arith.constant 1.000000e+00 : f32
    %25 = vector.broadcast %cst_12 : f32 to vector<1x8x128xf32>
    %26 = arith.subf %24, %25 : vector<1x8x128xf32>
    %cst_13 = arith.constant 1.000000e+01 : f32
    %27 = vector.broadcast %cst_13 : f32 to vector<1x8x128xf32>
    %28 = arith.mulf %26, %27 : vector<1x8x128xf32>
    %cst_14 = arith.constant -1.000000e+30 : f32
    %29 = vector.shape_cast %18 : vector<1x1x128xi1> to vector<1x1x128xi1>
    %30 = vector.broadcast %29 : vector<1x1x128xi1> to vector<1x8x128xi1>
    %31 = vector.broadcast %cst_14 : f32 to vector<1x8x128xf32>
    %32 = arith.select %30, %28, %31 : vector<1x8x128xi1>, vector<1x8x128xf32>
    %cst_15 = arith.constant 9.99999993E-9 : f32
    %33 = vector.broadcast %cst_15 : f32 to vector<1x8xf32>
    %34 = arith.addf %3, %33 : vector<1x8xf32>
    %35 = math.log %34 : vector<1x8xf32>
    %cst_16 = arith.constant 0.000000e+00 : f32
    %36 = vector.broadcast %cst_16 : f32 to vector<1x8xf32>
    %cst_17 = arith.constant 0.000000e+00 : f32
    %37 = vector.broadcast %cst_17 : f32 to vector<1x128xf32>
    %cst_18 = arith.constant -2.07944155 : f32
    %c0_i32 = arith.constant 0 : i32
    %cst_19 = arith.constant 0x7F800000 : f32
    %38:5 = scf.while (%arg7 = %c0_i32, %arg8 = %cst_19, %arg9 = %36, %arg10 = %37, %arg11 = %32) : (i32, f32, vector<1x8xf32>, vector<1x128xf32>, vector<1x8x128xf32>) -> (i32, f32, vector<1x8xf32>, vector<1x128xf32>, vector<1x8x128xf32>) {
      %c50_i32 = arith.constant 50 : i32
      %54 = arith.cmpi slt, %arg7, %c50_i32 : i32
      %cst_31 = arith.constant 9.99999997E-7 : f32
      %55 = arith.cmpf oge, %arg8, %cst_31 : f32
      %56 = arith.andi %54, %55 : i1
      scf.condition(%56) %arg7, %arg8, %arg9, %arg10, %arg11 : i32, f32, vector<1x8xf32>, vector<1x128xf32>, vector<1x8x128xf32>
    } do {
    ^bb0(%arg7: i32, %arg8: f32, %arg9: vector<1x8xf32>, %arg10: vector<1x128xf32>, %arg11: vector<1x8x128xf32>):
      %cst_31 = arith.constant dense<0xFF800000> : vector<1x8xf32>
      %54 = vector.multi_reduction <maximumf>, %arg11, %cst_31 [2] : vector<1x8x128xf32> to vector<1x8xf32>
      %55 = vector.shape_cast %54 : vector<1x8xf32> to vector<1x8x1xf32>
      %56 = vector.broadcast %55 : vector<1x8x1xf32> to vector<1x8x128xf32>
      %57 = arith.subf %arg11, %56 : vector<1x8x128xf32>
      %58 = math.exp %57 : vector<1x8x128xf32>
      %cst_32 = arith.constant dense<0.000000e+00> : vector<1x8xf32>
      %59 = vector.multi_reduction <add>, %58, %cst_32 [2] : vector<1x8x128xf32> to vector<1x8xf32>
      %60 = math.log %59 : vector<1x8xf32>
      %61 = vector.shape_cast %55 : vector<1x8x1xf32> to vector<1x8xf32>
      %62 = arith.addf %60, %61 : vector<1x8xf32>
      %63 = arith.subf %35, %62 : vector<1x8xf32>
      %64 = arith.addf %arg9, %63 : vector<1x8xf32>
      %cst_33 = arith.constant 9.99999993E-9 : f32
      %65 = vector.broadcast %cst_33 : f32 to vector<1x8xf32>
      %66 = arith.addf %3, %65 : vector<1x8xf32>
      %67 = arith.divf %66, %59 : vector<1x8xf32>
      %68 = vector.shape_cast %67 : vector<1x8xf32> to vector<1x1x8xf32>
      "tpu.trace_start"() <{level = 10 : i32, message = "bkn,bnm->bkm"}> : () -> ()
      %cst_34 = arith.constant dense<0.000000e+00> : vector<1x1x128xf32>
      %69 = tpu.matmul %68, %58, %cst_34 {dimension_numbers = #tpu.dot_dimension_numbers<[2], [1], [1], [2], [0, 0, 0, 1, 1, 2], [0], [0]>} : vector<1x1x8xf32>, vector<1x8x128xf32>, vector<1x1x128xf32> -> vector<1x1x128xf32>
      "tpu.trace_stop"() : () -> ()
      %70 = vector.shape_cast %69 : vector<1x1x128xf32> to vector<1x128xf32>
      %cst_35 = arith.constant 9.99999935E-39 : f32
      %71 = vector.broadcast %cst_35 : f32 to vector<1x128xf32>
      %72 = arith.maximumf %70, %71 : vector<1x128xf32>
      %73 = math.log %72 : vector<1x128xf32>
      %74 = vector.broadcast %cst_18 : f32 to vector<1x128xf32>
      %75 = arith.subf %74, %73 : vector<1x128xf32>
      %76 = arith.addf %75, %arg10 : vector<1x128xf32>
      %cst_36 = arith.constant 0.000000e+00 : f32
      %77 = vector.broadcast %cst_36 : f32 to vector<1x128xf32>
      %78 = arith.select %17, %76, %77 : vector<1x128xi1>, vector<1x128xf32>
      %79 = vector.shape_cast %63 : vector<1x8xf32> to vector<1x8x1xf32>
      %80 = vector.broadcast %79 : vector<1x8x1xf32> to vector<1x8x128xf32>
      %81 = arith.addf %arg11, %80 : vector<1x8x128xf32>
      %82 = arith.subf %78, %arg10 : vector<1x128xf32>
      %83 = vector.shape_cast %82 : vector<1x128xf32> to vector<1x1x128xf32>
      %84 = vector.broadcast %83 : vector<1x1x128xf32> to vector<1x8x128xf32>
      %85 = arith.addf %81, %84 : vector<1x8x128xf32>
      %86 = math.absf %63 : vector<1x8xf32>
      %87 = vector.shape_cast %86 : vector<1x8xf32> to vector<1x1x8xf32>
      %cst_37 = arith.constant dense<0.000000e+00> : vector<1xf32>
      %88 = vector.multi_reduction <add>, %87, %cst_37 [1, 2] : vector<1x1x8xf32> to vector<1xf32>
      %89 = vector.shape_cast %88 : vector<1xf32> to vector<1x1x1xf32>
      %90 = vector.extract %89[0, 0, 0] : f32 from vector<1x1x1xf32>
      %cst_38 = arith.constant 1.000000e-01 : f32
      %91 = arith.mulf %cst_38, %90 : f32
      %c1_i32 = arith.constant 1 : i32
      %92 = arith.addi %arg7, %c1_i32 : i32
      scf.yield %92, %91, %64, %78, %85 : i32, f32, vector<1x8xf32>, vector<1x128xf32>, vector<1x8x128xf32>
    }
    %39 = vector.shape_cast %38#2 : vector<1x8xf32> to vector<1x8x1xf32>
    %40 = vector.broadcast %39 : vector<1x8x1xf32> to vector<1x8x128xf32>
    %41 = arith.addf %32, %40 : vector<1x8x128xf32>
    %42 = vector.shape_cast %38#3 : vector<1x128xf32> to vector<1x1x128xf32>
    %43 = vector.broadcast %42 : vector<1x1x128xf32> to vector<1x8x128xf32>
    %44 = arith.addf %41, %43 : vector<1x8x128xf32>
    %45 = math.exp %44 : vector<1x8x128xf32>
    %cst_20 = arith.constant -1.000000e-01 : f32
    %46 = vector.broadcast %cst_20 : f32 to vector<1x8x128xf32>
    %47 = arith.mulf %46, %32 : vector<1x8x128xf32>
    %48 = arith.mulf %45, %47 : vector<1x8x128xf32>
    %cst_21 = arith.constant dense<0.000000e+00> : vector<1x128xf32>
    %49 = vector.multi_reduction <add>, %48, %cst_21 [1] : vector<1x8x128xf32> to vector<1x128xf32>
    %50 = vector.shape_cast %49 : vector<1x128xf32> to vector<1x1x128xf32>
    %c0_22 = arith.constant 0 : index
    %c0_23 = arith.constant 0 : index
    %c0_24 = arith.constant 0 : index
    %51 = vector.load %arg4[%c0_22, %c0_23, %c0_24] : memref<1x1x128xf32, #tpu.memory_space<vmem>>, vector<1x1x128xf32>
    tpu.vector_store %arg4[%c0_22, %c0_23, %c0_24], %50 {strides = array<i32>} : memref<1x1x128xf32, #tpu.memory_space<vmem>>, vector<1x1x128xf32>,
    %c0_25 = arith.constant 0 : index
    %c0_26 = arith.constant 0 : index
    %c0_27 = arith.constant 0 : index
    %52 = vector.load %arg5[%c0_25, %c0_26, %c0_27] : memref<1x8x128xf32, #tpu.memory_space<vmem>>, vector<1x8x128xf32>
    tpu.vector_store %arg5[%c0_25, %c0_26, %c0_27], %45 {strides = array<i32>} : memref<1x8x128xf32, #tpu.memory_space<vmem>>, vector<1x8x128xf32>,
    %c0_28 = arith.constant 0 : index
    %c0_29 = arith.constant 0 : index
    %c0_30 = arith.constant 0 : index
    %53 = vector.load %arg6[%c0_28, %c0_29, %c0_30] : memref<1x8x128xf32, #tpu.memory_space<vmem>>, vector<1x8x128xf32>
    tpu.vector_store %arg6[%c0_28, %c0_29, %c0_30], %47 {strides = array<i32>} : memref<1x8x128xf32, #tpu.memory_space<vmem>>, vector<1x8x128xf32>,
    return
  }
  func.func @transform_0(%arg0: i32) -> (i32, i32, i32) {
    %c0_i32 = arith.constant 0 : i32
    %c0_i32_0 = arith.constant 0 : i32
    %c0_i32_1 = arith.constant 0 : i32
    return %arg0, %c0_i32, %c0_i32_0 : i32, i32, i32
  }
  func.func @transform_1(%arg0: i32) -> (i32, i32, i32) {
    %c0_i32 = arith.constant 0 : i32
    %c0_i32_0 = arith.constant 0 : i32
    %c0_i32_1 = arith.constant 0 : i32
    return %arg0, %c0_i32, %c0_i32_0 : i32, i32, i32
  }
  func.func @transform_2(%arg0: i32) -> (i32, i32, i32) {
    %c0_i32 = arith.constant 0 : i32
    %c0_i32_0 = arith.constant 0 : i32
    %c0_i32_1 = arith.constant 0 : i32
    return %arg0, %c0_i32, %c0_i32_0 : i32, i32, i32
  }
  func.func @transform_3(%arg0: i32) -> (i32, i32, i32) {
    %c0_i32 = arith.constant 0 : i32
    %c0_i32_0 = arith.constant 0 : i32
    %c0_i32_1 = arith.constant 0 : i32
    return %arg0, %c0_i32, %c0_i32_0 : i32, i32, i32
  }
  func.func @transform_4(%arg0: i32) -> (i32, i32, i32) {
    %c0_i32 = arith.constant 0 : i32
    %c0_i32_0 = arith.constant 0 : i32
    %c0_i32_1 = arith.constant 0 : i32
    return %arg0, %c0_i32, %c0_i32_0 : i32, i32, i32
  }
  func.func @transform_5(%arg0: i32) -> (i32, i32, i32) {
    %c0_i32 = arith.constant 0 : i32
    %c0_i32_0 = arith.constant 0 : i32
    %c0_i32_1 = arith.constant 0 : i32
    return %arg0, %c0_i32, %c0_i32_0 : i32, i32, i32
  }
}

module attributes {stable_mosaic.version = 11 : i64} {
  func.func @_sinkhorn_kernel(%arg0: i32, %arg1: memref<1x8x32xf32, #tpu.memory_space<vmem>>, %arg2: memref<1x32x128xf32, #tpu.memory_space<vmem>>, %arg3: memref<1x1x8xf32, #tpu.memory_space<vmem>>, %arg4: memref<1x1x128xf32, #tpu.memory_space<vmem>>, %arg5: memref<1x8x128xf32, #tpu.memory_space<vmem>>, %arg6: memref<1x8x128xf32, #tpu.memory_space<vmem>>) attributes {dimension_semantics = [#tpu.dimension_semantics<parallel>], iteration_bounds = array<i64: 2>, scalar_prefetch = 0 : i64, scratch_operands = 0 : i64, tpu.core_type = #tpu.core_type<tc>, window_params = [{transform_indices = @transform_0, window_bounds = array<i64: 1, 8, 32>}, {transform_indices = @transform_1, window_bounds = array<i64: 1, 32, 128>}, {transform_indices = @transform_2, window_bounds = array<i64: 1, 1, 8>}, {transform_indices = @transform_3, window_bounds = array<i64: 1, 1, 128>}, {transform_indices = @transform_4, window_bounds = array<i64: 1, 8, 128>}, {transform_indices = @transform_5, window_bounds = array<i64: 1, 8, 128>}]} {
    %c0 = arith.constant 0 : index
    %c0_0 = arith.constant 0 : index
    %c0_1 = arith.constant 0 : index
    %0 = vector.load %arg1[%c0, %c0_0, %c0_1] : memref<1x8x32xf32, #tpu.memory_space<vmem>>, vector<1x8x32xf32>
    %c0_2 = arith.constant 0 : index
    %c0_3 = arith.constant 0 : index
    %c0_4 = arith.constant 0 : index
    %1 = vector.load %arg2[%c0_2, %c0_3, %c0_4] : memref<1x32x128xf32, #tpu.memory_space<vmem>>, vector<1x32x128xf32>
    %c0_5 = arith.constant 0 : index
    %c0_6 = arith.constant 0 : index
    %c0_7 = arith.constant 0 : index
    %2 = vector.load %arg3[%c0_5, %c0_6, %c0_7] : memref<1x1x8xf32, #tpu.memory_space<vmem>>, vector<1x1x8xf32>
    %3 = vector.shape_cast %2 : vector<1x1x8xf32> to vector<1x8xf32>
    "tpu.trace_start"() <{level = 10 : i32, message = "bnd,bdm->bnm"}> : () -> ()
    %cst = arith.constant dense<0.000000e+00> : vector<1x8x128xf32>
    %4 = tpu.matmul %0, %1, %cst {dimension_numbers = #tpu.dot_dimension_numbers<[2], [1], [1], [2], [0, 0, 0, 1, 1, 2], [0], [0]>} : vector<1x8x32xf32>, vector<1x32x128xf32>, vector<1x8x128xf32> -> vector<1x8x128xf32>
    "tpu.trace_stop"() : () -> ()
    %5 = arith.mulf %0, %0 : vector<1x8x32xf32>
    %cst_8 = arith.constant dense<0.000000e+00> : vector<1x8xf32>
    %6 = vector.multi_reduction <add>, %5, %cst_8 [2] : vector<1x8x32xf32> to vector<1x8xf32>
    %cst_9 = arith.constant 1.000000e-16 : f32
    %7 = vector.broadcast %cst_9 : f32 to vector<1x8xf32>
    %8 = arith.maximumf %6, %7 : vector<1x8xf32>
    %9 = math.rsqrt %8 : vector<1x8xf32>
    %10 = arith.mulf %1, %1 : vector<1x32x128xf32>
    %cst_10 = arith.constant dense<0.000000e+00> : vector<1x128xf32>
    %11 = vector.multi_reduction <add>, %10, %cst_10 [1] : vector<1x32x128xf32> to vector<1x128xf32>
    %cst_11 = arith.constant 1.000000e-16 : f32
    %12 = vector.broadcast %cst_11 : f32 to vector<1x128xf32>
    %13 = arith.maximumf %11, %12 : vector<1x128xf32>
    %14 = math.rsqrt %13 : vector<1x128xf32>
    %15 = tpu.iota {dimensions = array<i32: 1>} : vector<1x128xi32>
    %c8_i32 = arith.constant 8 : i32
    %16 = vector.broadcast %c8_i32 : i32 to vector<1x128xi32>
    %17 = arith.cmpi slt, %15, %16 : vector<1x128xi32>
    %18 = vector.shape_cast %17 : vector<1x128xi1> to vector<1x1x128xi1>
    %19 = vector.shape_cast %9 : vector<1x8xf32> to vector<1x8x1xf32>
    %20 = vector.broadcast %19 : vector<1x8x1xf32> to vector<1x8x128xf32>
    %21 = arith.mulf %4, %20 : vector<1x8x128xf32>
    %22 = vector.shape_cast %14 : vector<1x128xf32> to vector<1x1x128xf32>
    %23 = vector.broadcast %22 : vector<1x1x128xf32> to vector<1x8x128xf32>
    %24 = arith.mulf %21, %23 : vector<1x8x128xf32>
    %cst_12 = arith.constant 1.000000e+00 : f32
    %25 = vector.broadcast %cst_12 : f32 to vector<1x8x128xf32>
    %26 = arith.subf %24, %25 : vector<1x8x128xf32>
    %cst_13 = arith.constant 1.000000e+01 : f32
    %27 = vector.broadcast %cst_13 : f32 to vector<1x8x128xf32>
    %28 = arith.mulf %26, %27 : vector<1x8x128xf32>
    %cst_14 = arith.constant -1.000000e+30 : f32
    %29 = vector.shape_cast %18 : vector<1x1x128xi1> to vector<1x1x128xi1>
    %30 = vector.broadcast %29 : vector<1x1x128xi1> to vector<1x8x128xi1>
    %31 = vector.broadcast %cst_14 : f32 to vector<1x8x128xf32>
    %32 = arith.select %30, %28, %31 : vector<1x8x128xi1>, vector<1x8x128xf32>
    %cst_15 = arith.constant 9.99999993E-9 : f32
    %33 = vector.broadcast %cst_15 : f32 to vector<1x8xf32>
    %34 = arith.addf %3, %33 : vector<1x8xf32>
    %35 = math.log %34 : vector<1x8xf32>
    %cst_16 = arith.constant 0.000000e+00 : f32
    %36 = vector.broadcast %cst_16 : f32 to vector<1x8xf32>
    %cst_17 = arith.constant 0.000000e+00 : f32
    %37 = vector.broadcast %cst_17 : f32 to vector<1x128xf32>
    %cst_18 = arith.constant -2.07944155 : f32
    %c0_i32 = arith.constant 0 : i32
    %cst_19 = arith.constant 0x7F800000 : f32
    %38:5 = scf.while (%arg7 = %c0_i32, %arg8 = %cst_19, %arg9 = %36, %arg10 = %37, %arg11 = %32) : (i32, f32, vector<1x8xf32>, vector<1x128xf32>, vector<1x8x128xf32>) -> (i32, f32, vector<1x8xf32>, vector<1x128xf32>, vector<1x8x128xf32>) {
      %c50_i32 = arith.constant 50 : i32
      %54 = arith.cmpi slt, %arg7, %c50_i32 : i32
      %cst_31 = arith.constant 9.99999997E-7 : f32
      %55 = arith.cmpf oge, %arg8, %cst_31 : f32
      %56 = arith.andi %54, %55 : i1
      scf.condition(%56) %arg7, %arg8, %arg9, %arg10, %arg11 : i32, f32, vector<1x8xf32>, vector<1x128xf32>, vector<1x8x128xf32>
    } do {
    ^bb0(%arg7: i32, %arg8: f32, %arg9: vector<1x8xf32>, %arg10: vector<1x128xf32>, %arg11: vector<1x8x128xf32>):
      %cst_31 = arith.constant dense<0xFF800000> : vector<1x8xf32>
      %54 = vector.multi_reduction <maximumf>, %arg11, %cst_31 [2] : vector<1x8x128xf32> to vector<1x8xf32>
      %55 = vector.shape_cast %54 : vector<1x8xf32> to vector<1x8x1xf32>
      %56 = vector.broadcast %55 : vector<1x8x1xf32> to vector<1x8x128xf32>
      %57 = arith.subf %arg11, %56 : vector<1x8x128xf32>
      %58 = math.exp %57 : vector<1x8x128xf32>
      %cst_32 = arith.constant dense<0.000000e+00> : vector<1x8xf32>
      %59 = vector.multi_reduction <add>, %58, %cst_32 [2] : vector<1x8x128xf32> to vector<1x8xf32>
      %60 = math.log %59 : vector<1x8xf32>
      %61 = vector.shape_cast %55 : vector<1x8x1xf32> to vector<1x8xf32>
      %62 = arith.addf %60, %61 : vector<1x8xf32>
      %63 = arith.subf %35, %62 : vector<1x8xf32>
      %64 = arith.addf %arg9, %63 : vector<1x8xf32>
      %cst_33 = arith.constant 9.99999993E-9 : f32
      %65 = vector.broadcast %cst_33 : f32 to vector<1x8xf32>
      %66 = arith.addf %3, %65 : vector<1x8xf32>
      %67 = arith.divf %66, %59 : vector<1x8xf32>
      %68 = vector.shape_cast %67 : vector<1x8xf32> to vector<1x1x8xf32>
      "tpu.trace_start"() <{level = 10 : i32, message = "bkn,bnm->bkm"}> : () -> ()
      %cst_34 = arith.constant dense<0.000000e+00> : vector<1x1x128xf32>
      %69 = tpu.matmul %68, %58, %cst_34 {dimension_numbers = #tpu.dot_dimension_numbers<[2], [1], [1], [2], [0, 0, 0, 1, 1, 2], [0], [0]>} : vector<1x1x8xf32>, vector<1x8x128xf32>, vector<1x1x128xf32> -> vector<1x1x128xf32>
      "tpu.trace_stop"() : () -> ()
      %70 = vector.shape_cast %69 : vector<1x1x128xf32> to vector<1x128xf32>
      %cst_35 = arith.constant 9.99999935E-39 : f32
      %71 = vector.broadcast %cst_35 : f32 to vector<1x128xf32>
      %72 = arith.maximumf %70, %71 : vector<1x128xf32>
      %73 = math.log %72 : vector<1x128xf32>
      %74 = vector.broadcast %cst_18 : f32 to vector<1x128xf32>
      %75 = arith.subf %74, %73 : vector<1x128xf32>
      %76 = arith.addf %75, %arg10 : vector<1x128xf32>
      %cst_36 = arith.constant 0.000000e+00 : f32
      %77 = vector.broadcast %cst_36 : f32 to vector<1x128xf32>
      %78 = arith.select %17, %76, %77 : vector<1x128xi1>, vector<1x128xf32>
      %79 = vector.shape_cast %63 : vector<1x8xf32> to vector<1x8x1xf32>
      %80 = vector.broadcast %79 : vector<1x8x1xf32> to vector<1x8x128xf32>
      %81 = arith.addf %arg11, %80 : vector<1x8x128xf32>
      %82 = arith.subf %78, %arg10 : vector<1x128xf32>
      %83 = vector.shape_cast %82 : vector<1x128xf32> to vector<1x1x128xf32>
      %84 = vector.broadcast %83 : vector<1x1x128xf32> to vector<1x8x128xf32>
      %85 = arith.addf %81, %84 : vector<1x8x128xf32>
      %86 = math.absf %63 : vector<1x8xf32>
      %87 = vector.shape_cast %86 : vector<1x8xf32> to vector<1x1x8xf32>
      %cst_37 = arith.constant dense<0.000000e+00> : vector<1xf32>
      %88 = vector.multi_reduction <add>, %87, %cst_37 [1, 2] : vector<1x1x8xf32> to vector<1xf32>
      %89 = vector.shape_cast %88 : vector<1xf32> to vector<1x1x1xf32>
      %90 = vector.extract %89[0, 0, 0] : f32 from vector<1x1x1xf32>
      %cst_38 = arith.constant 1.000000e-01 : f32
      %91 = arith.mulf %cst_38, %90 : f32
      %c1_i32 = arith.constant 1 : i32
      %92 = arith.addi %arg7, %c1_i32 : i32
      scf.yield %92, %91, %64, %78, %85 : i32, f32, vector<1x8xf32>, vector<1x128xf32>, vector<1x8x128xf32>
    }
    %39 = vector.shape_cast %38#2 : vector<1x8xf32> to vector<1x8x1xf32>
    %40 = vector.broadcast %39 : vector<1x8x1xf32> to vector<1x8x128xf32>
    %41 = arith.addf %32, %40 : vector<1x8x128xf32>
    %42 = vector.shape_cast %38#3 : vector<1x128xf32> to vector<1x1x128xf32>
    %43 = vector.broadcast %42 : vector<1x1x128xf32> to vector<1x8x128xf32>
    %44 = arith.addf %41, %43 : vector<1x8x128xf32>
    %45 = math.exp %44 : vector<1x8x128xf32>
    %cst_20 = arith.constant -1.000000e-01 : f32
    %46 = vector.broadcast %cst_20 : f32 to vector<1x8x128xf32>
    %47 = arith.mulf %46, %32 : vector<1x8x128xf32>
    %48 = arith.mulf %45, %47 : vector<1x8x128xf32>
    %cst_21 = arith.constant dense<0.000000e+00> : vector<1x128xf32>
    %49 = vector.multi_reduction <add>, %48, %cst_21 [1] : vector<1x8x128xf32> to vector<1x128xf32>
    %50 = vector.shape_cast %49 : vector<1x128xf32> to vector<1x1x128xf32>
    %c0_22 = arith.constant 0 : index
    %c0_23 = arith.constant 0 : index
    %c0_24 = arith.constant 0 : index
    %51 = vector.load %arg4[%c0_22, %c0_23, %c0_24] : memref<1x1x128xf32, #tpu.memory_space<vmem>>, vector<1x1x128xf32>
    tpu.vector_store %arg4[%c0_22, %c0_23, %c0_24], %50 {strides = array<i32>} : memref<1x1x128xf32, #tpu.memory_space<vmem>>, vector<1x1x128xf32>,
    %c0_25 = arith.constant 0 : index
    %c0_26 = arith.constant 0 : index
    %c0_27 = arith.constant 0 : index
    %52 = vector.load %arg5[%c0_25, %c0_26, %c0_27] : memref<1x8x128xf32, #tpu.memory_space<vmem>>, vector<1x8x128xf32>
    tpu.vector_store %arg5[%c0_25, %c0_26, %c0_27], %45 {strides = array<i32>} : memref<1x8x128xf32, #tpu.memory_space<vmem>>, vector<1x8x128xf32>,
    %c0_28 = arith.constant 0 : index
    %c0_29 = arith.constant 0 : index
    %c0_30 = arith.constant 0 : index
    %53 = vector.load %arg6[%c0_28, %c0_29, %c0_30] : memref<1x8x128xf32, #tpu.memory_space<vmem>>, vector<1x8x128xf32>
    tpu.vector_store %arg6[%c0_28, %c0_29, %c0_30], %47 {strides = array<i32>} : memref<1x8x128xf32, #tpu.memory_space<vmem>>, vector<1x8x128xf32>,
    return
  }
  func.func @transform_0(%arg0: i32) -> (i32, i32, i32) {
    %c0_i32 = arith.constant 0 : i32
    %c0_i32_0 = arith.constant 0 : i32
    %c0_i32_1 = arith.constant 0 : i32
    return %arg0, %c0_i32, %c0_i32_0 : i32, i32, i32
  }
  func.func @transform_1(%arg0: i32) -> (i32, i32, i32) {
    %c0_i32 = arith.constant 0 : i32
    %c0_i32_0 = arith.constant 0 : i32
    %c0_i32_1 = arith.constant 0 : i32
    return %arg0, %c0_i32, %c0_i32_0 : i32, i32, i32
  }
  func.func @transform_2(%arg0: i32) -> (i32, i32, i32) {
    %c0_i32 = arith.constant 0 : i32
    %c0_i32_0 = arith.constant 0 : i32
    %c0_i32_1 = arith.constant 0 : i32
    return %arg0, %c0_i32, %c0_i32_0 : i32, i32, i32
  }
  func.func @transform_3(%arg0: i32) -> (i32, i32, i32) {
    %c0_i32 = arith.constant 0 : i32
    %c0_i32_0 = arith.constant 0 : i32
    %c0_i32_1 = arith.constant 0 : i32
    return %arg0, %c0_i32, %c0_i32_0 : i32, i32, i32
  }
  func.func @transform_4(%arg0: i32) -> (i32, i32, i32) {
    %c0_i32 = arith.constant 0 : i32
    %c0_i32_0 = arith.constant 0 : i32
    %c0_i32_1 = arith.constant 0 : i32
    return %arg0, %c0_i32, %c0_i32_0 : i32, i32, i32
  }
  func.func @transform_5(%arg0: i32) -> (i32, i32, i32) {
    %c0_i32 = arith.constant 0 : i32
    %c0_i32_0 = arith.constant 0 : i32
    %c0_i32_1 = arith.constant 0 : i32
    return %arg0, %c0_i32, %c0_i32_0 : i32, i32, i32
  }
}

</mosaic_0001>

<llo_original>
// kernel: tpu_custom_call.1
$region0: #{tpu_custom_call.1}
  #allocation0 [shape = 'u32[]', space=smem, size = 0x4, offset = 0x4, fixed_abs, tag = 'smem constant byte address 0x4 - core index']
  #allocation1 [shape = 'u32[144,128]{1,0:T(1,128)}', space=vmem, size = 0x12000, scoped, tag = 'internal scratch']
  %s0 = inlined_call_operand.hbm [shape: f32[2,8,32], index: 0, kind: input, shape index: {}]
  %s1 = inlined_call_operand.hbm [shape: f32[2,32,128], index: 1, kind: input, shape index: {}]
  %s2 = inlined_call_operand.vmem [shape: f32[2,1,8], index: 2, kind: input, shape index: {}]
  %s3 = inlined_call_operand.hbm [shape: f32[2,1,128], index: 3, kind: output, shape index: {0}]
  %s4 = inlined_call_operand.hbm [shape: f32[2,8,128], index: 4, kind: output, shape index: {1}]
  %s5 = inlined_call_operand.hbm [shape: f32[2,8,128], index: 5, kind: output, shape index: {2}]
  %6 = xla_tuple %s3, %s4, %s5
  %s7 = sld [smem:[#allocation0]]
  $region76: #{tpu_custom_call.1} parent=0
    _
  %s9 = ssub.s32 1, %s7
  %s10 = scalar_select 0, %s9, %s7
  $region1: #{tpu_custom_call.1} parent=0
    #allocation2 [shape = 'u8[8192]{0}', space=vmem, size = 0x2000, scoped, tag = 'input window, operand 0']
    #allocation3 [shape = 's32[2]{0}', space=sflag, size = 0x8, scoped, tag = 'scoped memory for tpu_custom_call.1']
    #allocation4 [shape = 's32[2]{0}', space=sflag, size = 0x8, scoped, tag = 'scoped memory for tpu_custom_call.1']
    #allocation5 [shape = 'u8[32768]{0}', space=vmem, size = 0x8000, scoped, tag = 'input window, operand 1']
    #allocation6 [shape = 's32[2]{0}', space=sflag, size = 0x8, scoped, tag = 'scoped memory for tpu_custom_call.1']
    #allocation7 [shape = 'u8[1024]{0}', space=vmem, size = 0x400, scoped, tag = 'output window, operand 0']
    #allocation8 [shape = 'u8[4096]{0}', space=vmem, size = 0x1000, scoped, tag = 'output window, operand 1, single buffered']
    #allocation9 [shape = 's32[1]{0}', space=sflag, size = 0x4, scoped, tag = 'scoped memory for tpu_custom_call.1']
    #allocation10 [shape = 'u8[4096]{0}', space=vmem, size = 0x1000, scoped, tag = 'output window, operand 2, single buffered']
    %11 = vsyncpa [#allocation3], 0
    %s12 = scalar_lea.sflag [#allocation3], 1
    %13 = vsyncpa %s12, 0
    %14 = vsyncpa [#allocation6], 0
    %s15 = scalar_lea.sflag [#allocation6], 1
    %16 = vsyncpa %s15, 0
    %17 = vsyncpa [#allocation4], 0
    %s18 = scalar_lea.sflag [#allocation4], 1
    %19 = vsyncpa %s18, 0
    %20 = vsyncpa [#allocation9], 0
    loop: start=0, step=1, limit=4
    $region2: #{tpu_custom_call.1} parent=1 // loop_pre_header
      _
    $region3: #{tpu_custom_call.1} parent=1 // loop_header
      %s22 = sphi 0, %s26
      %p23 = scmp.ge.s32.totalorder %s22, 4
      %s32 = sphi 0, %s34
      %s35 = sphi 0, %s32
      %s36 = sphi 0, %s35
      %s52 = sphi 0, %s36
      %s58 = sphi 0, %s60
      %s61 = sphi 0, %s58
      %s62 = sphi 0, %s61
      %s78 = sphi 0, %s62
      %s84 = sphi 0, %s86
      %s87 = sphi 0, %s84
      %s88 = sphi 0, %s87
      %s104 = sphi 0, %s88
      %s110 = sphi 0, %s112
      %s113 = sphi 0, %s110
      %s114 = sphi 0, %s113
      %s130 = sphi 0, %s114
      %s136 = sphi 0, %s138
      %s139 = sphi 0, %s136
      %s140 = sphi 0, %s139
      %s156 = sphi 0, %s140
      %s162 = sphi 0, %s164
      %s165 = sphi 0, %s162
      %s166 = sphi 0, %s165
      %s182 = sphi 0, %s166
    $region4: #{tpu_custom_call.1} parent=1 // loop_header_branch
      %25 = sbr.rel (%p23) target = $region8
    $region5: #{tpu_custom_call.1} parent=1 // loop_body
      %s27 = ssub.s32 %s22, 1
      %s28 = ssub.s32 %s22, 2
      %s29 = sadd.s32 %s22, 1
      %s30 = ssub.s32 %s22, %s29
      %p31 = scmp.eq.s32.totalorder %s30, 0
      %s33 = sadd.s32 %s32, 1
      %s34 = scalar_select %p31, %s32, %s33
      %p37 = pneg %p31
      %p38 = scmp.eq.s32.totalorder %s22, 1
      %p39 = por %p37, %p38
      %p40 = scmp.ne.s32.totalorder %s32, %s35
      %p41 = scmp.eq.s32.totalorder %s22, 0
      %p42 = por %p40, %p41
      %p43 = scmp.ne.s32.totalorder %s32, %s35
      %p44 = scmp.eq.s32.totalorder %s27, 1
      %p45 = por %p43, %p44
      %p46 = scmp.ne.s32.totalorder %s35, %s36
      %p47 = scmp.eq.s32.totalorder %s27, 0
      %p48 = por %p46, %p47
      %p49 = scmp.ne.s32.totalorder %s35, %s36
      %p50 = scmp.eq.s32.totalorder %s28, 1
      %p51 = por %p49, %p50
      %p53 = scmp.ne.s32.totalorder %s36, %s52
      %p54 = scmp.eq.s32.totalorder %s28, 0
      %p55 = por %p53, %p54
      %s56 = ssub.s32 %s22, %s29
      %p57 = scmp.eq.s32.totalorder %s56, 0
      %s59 = sadd.s32 %s58, 1
      %s60 = scalar_select %p57, %s58, %s59
      %p63 = pneg %p57
      %p64 = scmp.eq.s32.totalorder %s22, 1
      %p65 = por %p63, %p64
      %p66 = scmp.ne.s32.totalorder %s58, %s61
      %p67 = scmp.eq.s32.totalorder %s22, 0
      %p68 = por %p66, %p67
      %p69 = scmp.ne.s32.totalorder %s58, %s61
      %p70 = scmp.eq.s32.totalorder %s27, 1
      %p71 = por %p69, %p70
      %p72 = scmp.ne.s32.totalorder %s61, %s62
      %p73 = scmp.eq.s32.totalorder %s27, 0
      %p74 = por %p72, %p73
      %p75 = scmp.ne.s32.totalorder %s61, %s62
      %p76 = scmp.eq.s32.totalorder %s28, 1
      %p77 = por %p75, %p76
      %p79 = scmp.ne.s32.totalorder %s62, %s78
      %p80 = scmp.eq.s32.totalorder %s28, 0
      %p81 = por %p79, %p80
      %s82 = ssub.s32 %s22, %s29
      %p83 = scmp.eq.s32.totalorder %s82, 0
      %s85 = sadd.s32 %s84, 1
      %s86 = scalar_select %p83, %s84, %s85
      %p89 = pneg %p83
      %p90 = scmp.eq.s32.totalorder %s22, 1
      %p91 = por %p89, %p90
      %p92 = scmp.ne.s32.totalorder %s84, %s87
      %p93 = scmp.eq.s32.totalorder %s22, 0
      %p94 = por %p92, %p93
      %p95 = scmp.ne.s32.totalorder %s84, %s87
      %p96 = scmp.eq.s32.totalorder %s27, 1
      %p97 = por %p95, %p96
      %p98 = scmp.ne.s32.totalorder %s87, %s88
      %p99 = scmp.eq.s32.totalorder %s27, 0
      %p100 = por %p98, %p99
      %p101 = scmp.ne.s32.totalorder %s87, %s88
      %p102 = scmp.eq.s32.totalorder %s28, 1
      %p103 = por %p101, %p102
      %p105 = scmp.ne.s32.totalorder %s88, %s104
      %p106 = scmp.eq.s32.totalorder %s28, 0
      %p107 = por %p105, %p106
      %s108 = ssub.s32 %s22, %s29
      %p109 = scmp.eq.s32.totalorder %s108, 0
      %s111 = sadd.s32 %s110, 1
      %s112 = scalar_select %p109, %s110, %s111
      %p115 = pneg %p109
      %p116 = scmp.eq.s32.totalorder %s22, 1
      %p117 = por %p115, %p116
      %p118 = scmp.ne.s32.totalorder %s110, %s113
      %p119 = scmp.eq.s32.totalorder %s22, 0
      %p120 = por %p118, %p119
      %p121 = scmp.ne.s32.totalorder %s110, %s113
      %p122 = scmp.eq.s32.totalorder %s27, 1
      %p123 = por %p121, %p122
      %p124 = scmp.ne.s32.totalorder %s113, %s114
      %p125 = scmp.eq.s32.totalorder %s27, 0
      %p126 = por %p124, %p125
      %p127 = scmp.ne.s32.totalorder %s113, %s114
      %p128 = scmp.eq.s32.totalorder %s28, 1
      %p129 = por %p127, %p128
      %p131 = scmp.ne.s32.totalorder %s114, %s130
      %p132 = scmp.eq.s32.totalorder %s28, 0
      %p133 = por %p131, %p132
      %s134 = ssub.s32 %s22, %s29
      %p135 = scmp.eq.s32.totalorder %s134, 0
      %s137 = sadd.s32 %s136, 1
      %s138 = scalar_select %p135, %s136, %s137
      %p141 = pneg %p135
      %p142 = scmp.eq.s32.totalorder %s22, 1
      %p143 = por %p141, %p142
      %p144 = scmp.ne.s32.totalorder %s136, %s139
      %p145 = scmp.eq.s32.totalorder %s22, 0
      %p146 = por %p144, %p145
      %p147 = scmp.ne.s32.totalorder %s136, %s139
      %p148 = scmp.eq.s32.totalorder %s27, 1
      %p149 = por %p147, %p148
      %p150 = scmp.ne.s32.totalorder %s139, %s140
      %p151 = scmp.eq.s32.totalorder %s27, 0
      %p152 = por %p150, %p151
      %p153 = scmp.ne.s32.totalorder %s139, %s140
      %p154 = scmp.eq.s32.totalorder %s28, 1
      %p155 = por %p153, %p154
      %p157 = scmp.ne.s32.totalorder %s140, %s156
      %p158 = scmp.eq.s32.totalorder %s28, 0
      %p159 = por %p157, %p158
      %s160 = ssub.s32 %s22, %s29
      %p161 = scmp.eq.s32.totalorder %s160, 0
      %s163 = sadd.s32 %s162, 1
      %s164 = scalar_select %p161, %s162, %s163
      %p167 = pneg %p161
      %p168 = scmp.eq.s32.totalorder %s22, 1
      %p169 = por %p167, %p168
      %p170 = scmp.ne.s32.totalorder %s162, %s165
      %p171 = scmp.eq.s32.totalorder %s22, 0
      %p172 = por %p170, %p171
      %p173 = scmp.ne.s32.totalorder %s162, %s165
      %p174 = scmp.eq.s32.totalorder %s27, 1
      %p175 = por %p173, %p174
      %p176 = scmp.ne.s32.totalorder %s165, %s166
      %p177 = scmp.eq.s32.totalorder %s27, 0
      %p178 = por %p176, %p177
      %p179 = scmp.ne.s32.totalorder %s165, %s166
      %p180 = scmp.eq.s32.totalorder %s28, 1
      %p181 = por %p179, %p180
      %p183 = scmp.ne.s32.totalorder %s166, %s182
      %p184 = scmp.eq.s32.totalorder %s28, 0
      %p185 = por %p183, %p184
      %p186 = scmp.le.s32.totalorder 1, %s22
      %p187 = scmp.lt.s32.totalorder %s22, 3
      %p188 = pnand %p186, %p187
      %p189 = pneg %p188
      // Predicated region
      $region9: #{tpu_custom_call.1} parent=5 // pred_check
        _
      $region10: #{tpu_custom_call.1} parent=5 // pred_check_branch
        %191 = sbr.rel (%p188) target = $region12
      $region11: #{tpu_custom_call.1} parent=5 // pred_region
        %s192 = ssub.s32 %s22, 1
      $region12: #{tpu_custom_call.1} parent=5 // pred_fallthru
        _
      %p193 = scmp.lt.s32.totalorder %s22, 2
      // Predicated region
      $region13: #{tpu_custom_call.1} parent=5 // pred_check
        %p194 = pneg %p193
      $region14: #{tpu_custom_call.1} parent=5 // pred_check_branch
        %196 = sbr.rel (%p194) target = $region16
      $region15: #{tpu_custom_call.1} parent=5 // pred_region
        // Predicated region
        $region17: #{tpu_custom_call.1} parent=15 // pred_check
          %p197 = pneg %p42
        $region18: #{tpu_custom_call.1} parent=15 // pred_check_branch
          %199 = sbr.rel (%p197) target = $region20
        $region19: #{tpu_custom_call.1} parent=15 // pred_region
          %s200 = sand.u32 %s32, 1
          %s201 = scalar_lea.sflag [#allocation3], %s200
          %s202 = sand.u32 %s32, 1
          %s203 = smul.addr %s202, 8
          %s204 = scalar_lea.vmem [#allocation2], %s203
          %s206 = ssub.s32 128, 128
          %207 = vsyncadd %s201, %s206
          %s208 = smul.addr %s22, 128
          %s209 = scalar_lea.hbm %s0, %s208
          %s211 = sshll.u32 %s204, 4
          %s212 = int_to_ptr.vmem [resolvable:$true] %s211
          %214 = dma.hbm_to_vmem [thread:$0]  %s209, 128, %s212, %s201
        $region20: #{tpu_custom_call.1} parent=15 // pred_fallthru
          _
        // Predicated region
        $region21: #{tpu_custom_call.1} parent=15 // pred_check
          %p215 = pneg %p68
        $region22: #{tpu_custom_call.1} parent=15 // pred_check_branch
          %217 = sbr.rel (%p215) target = $region24
        $region23: #{tpu_custom_call.1} parent=15 // pred_region
          %s218 = sand.u32 %s58, 1
          %s219 = scalar_lea.sflag [#allocation6], %s218
          %s220 = sand.u32 %s58, 1
          %s221 = smul.addr %s220, 32
          %s222 = scalar_lea.vmem [#allocation5], %s221
          %s224 = ssub.s32 512, 512
          %225 = vsyncadd %s219, %s224
          %s226 = smul.addr %s22, 4
          %s227 = smul.addr %s226, 128
          %s228 = scalar_lea.hbm %s1, %s227
          %s229 = sshll.u32 %s222, 4
          %s230 = int_to_ptr.vmem [resolvable:$true] %s229
          %235 = dma.hbm_to_vmem [thread:$0]  %s228, 512, %s230, %s219, 128, 128, 8
        $region24: #{tpu_custom_call.1} parent=15 // pred_fallthru
          _
        // Predicated region
        $region25: #{tpu_custom_call.1} parent=15 // pred_check
          %p236 = pneg %p94
        $region26: #{tpu_custom_call.1} parent=15 // pred_check_branch
          %238 = sbr.rel (%p236) target = $region28
        $region27: #{tpu_custom_call.1} parent=15 // pred_region
          %p239 = scmp.lt.s32.totalorder %s22, 1
          %s240 = scalar_select %p239, %s22, 1
          %s241 = scalar_lea.vmem %s2, %s240
        $region28: #{tpu_custom_call.1} parent=15 // pred_fallthru
          _
      $region16: #{tpu_custom_call.1} parent=5 // pred_fallthru
        _
      %p242 = scmp.le.s32.totalorder 1, %s22
      %p243 = scmp.lt.s32.totalorder %s22, 3
      %p244 = pnand %p242, %p243
      %p245 = pneg %p244
      // Predicated region
      $region29: #{tpu_custom_call.1} parent=5 // pred_check
        _
      $region30: #{tpu_custom_call.1} parent=5 // pred_check_branch
        %247 = sbr.rel (%p244) target = $region32
      $region31: #{tpu_custom_call.1} parent=5 // pred_region
        %s248 = ssub.s32 %s22, 1
        %s249 = sand.u32 %s35, 1
        %s250 = scalar_lea.sflag [#allocation3], %s249
        %s251 = sand.u32 %s35, 1
        %s252 = smul.addr %s251, 8
        %s253 = scalar_lea.vmem [#allocation2], %s252
        // Predicated region
        $region33: #{tpu_custom_call.1} parent=31 // pred_check
          %p254 = pneg %p48
        $region34: #{tpu_custom_call.1} parent=31 // pred_check_branch
          %256 = sbr.rel (%p254) target = $region36
        $region35: #{tpu_custom_call.1} parent=31 // pred_region
          %257 = dma.done %s250, 128
        $region36: #{tpu_custom_call.1} parent=31 // pred_fallthru
          _
        %s258 = sand.u32 %s61, 1
        %s259 = scalar_lea.sflag [#allocation6], %s258
        %s260 = sand.u32 %s61, 1
        %s261 = smul.addr %s260, 32
        %s262 = scalar_lea.vmem [#allocation5], %s261
        // Predicated region
        $region37: #{tpu_custom_call.1} parent=31 // pred_check
          %p263 = pneg %p74
        $region38: #{tpu_custom_call.1} parent=31 // pred_check_branch
          %265 = sbr.rel (%p263) target = $region40
        $region39: #{tpu_custom_call.1} parent=31 // pred_region
          %266 = dma.done %s259, 512
        $region40: #{tpu_custom_call.1} parent=31 // pred_fallthru
          _
        %s267 = sand.u32 %s35, 1
        %s268 = scalar_lea.sflag [#allocation3], %s267
        %s269 = sand.u32 %s35, 1
        %s270 = smul.addr %s269, 8
        %s271 = scalar_lea.vmem [#allocation2], %s270
        %p272 = pneg %p48
        %p273 = pneg %p45
        %s274 = sand.u32 %s61, 1
        %s275 = scalar_lea.sflag [#allocation6], %s274
        %s276 = sand.u32 %s61, 1
        %s277 = smul.addr %s276, 32
        %s278 = scalar_lea.vmem [#allocation5], %s277
        %p279 = pneg %p74
        %p280 = pneg %p71
        %p281 = scmp.lt.s32.totalorder %s27, 1
        %s282 = scalar_select %p281, %s27, 1
        %s283 = scalar_lea.vmem %s2, %s282
        %p284 = pneg %p100
        %p285 = pneg %p97
        %p286 = pneg %p126
        %p287 = pneg %p123
        %s288 = sand.u32 %s113, 1
        %s289 = scalar_lea.sflag [#allocation4], %s288
        %s290 = sand.u32 %s113, 1
        %s291 = scalar_lea.vmem [#allocation7], %s290
        %p292 = pneg %p152
        %p293 = pneg %p149
        %p294 = pneg %p178
        %p295 = pneg %p175
        %p296 = scmp.lt.s32.totalorder %s27, 1
        %s297 = scalar_select %p296, %s27, 1
        %s298 = scalar_lea.vmem %s2, %s297
        %v299 = vld [vmem:[%s253] sm:$0xff]
        %v300 = vld [vmem:[%s262] sm:$0xff]
        %v301 = vld [vmem:[%s262 + $0x8] sm:$0xff]
        %v302 = vld [vmem:[%s262 + $0x10] sm:$0xff]
        %v303 = vld [vmem:[%s262 + $0x18] sm:$0xff]
        %v304 = vld [vmem:[%s298] sm:$0x1]
        %vm305 = vcmask 261120
        %v307 = vsel %vm305, %v299, 0
        %309 = vmatprep.subr.mxu0 0.0
        %310 = vmatpush1.msra.mxu0 %v300
        %311 = vmatprep.subr.mxu0 0.0
        %312 = vmatpush1.msra.mxu0 %v301
        %313 = vmatprep.subr.mxu0 0.0
        %314 = vmatpush1.msra.mxu0 %v302
        %315 = vmatprep.subr.mxu0 0.0
        %316 = vmatpush1.msra.mxu0 %v303
        %317 = vmatprep.subr.mxu0 0.0
        %318 = vmatpush1.msra.mxu0 0.0
        %319 = vmatprep.subr.mxu0 0.0
        %320 = vmatpush1.msra.mxu0 0.0
        %321 = vmatprep.subr.mxu0 0.0
        %322 = vmatpush1.msra.mxu0 0.0
        %323 = vmatprep.subr.mxu0 0.0
        %324 = vmatpush1.msra.mxu0 0.0
        %325 = vmatprep.subr.mxu0 0.0
        %326 = vmatpush1.msra.mxu0 0.0
        %327 = vmatprep.subr.mxu0 0.0
        %328 = vmatpush1.msra.mxu0 0.0
        %329 = vmatprep.subr.mxu0 0.0
        %330 = vmatpush1.msra.mxu0 0.0
        %331 = vmatprep.subr.mxu0 0.0
        %332 = vmatpush1.msra.mxu0 0.0
        %333 = vmatprep.subr.mxu0 0.0
        %334 = vmatpush1.msra.mxu0 0.0
        %335 = vmatprep.subr.mxu0 0.0
        %336 = vmatpush1.msra.mxu0 0.0
        %337 = vmatprep.subr.mxu0 0.0
        %338 = vmatpush1.msra.mxu0 0.0
        %339 = vmatprep.subr.mxu0 0.0
        %340 = vmatpush1.msra.mxu0 0.0
        %341 = vmatprep.subr.mxu0 0.0
        %342 = vmatpush1.msra.mxu0 0.0
        %343 = vmatprep.subr.mxu0 0.0
        %344 = vmatpush1.msra.mxu0 0.0
        %345 = vmatprep.subr.mxu0 0.0
        %346 = vmatpush1.msra.mxu0 0.0
        %347 = vmatprep.subr.mxu0 0.0
        %348 = vmatpush1.msra.mxu0 0.0
        %349 = vmatprep.subr.mxu0 0.0
        %350 = vmatpush1.msra.mxu0 0.0
        %351 = vmatprep.subr.mxu0 0.0
        %352 = vmatpush1.msra.mxu0 0.0
        %353 = vmatprep.subr.mxu0 0.0
        %354 = vmatpush1.msra.mxu0 0.0
        %355 = vmatprep.subr.mxu0 0.0
        %356 = vmatpush1.msra.mxu0 0.0
        %357 = vmatprep.subr.mxu0 0.0
        %358 = vmatpush1.msra.mxu0 0.0
        %359 = vmatprep.subr.mxu0 0.0
        %360 = vmatpush1.msra.mxu0 0.0
        %361 = vmatprep.subr.mxu0 0.0
        %362 = vmatpush1.msra.mxu0 0.0
        %363 = vmatprep.subr.mxu0 0.0
        %364 = vmatpush1.msra.mxu0 0.0
        %365 = vmatprep.subr.mxu0 0.0
        %366 = vmatpush1.msra.mxu0 0.0
        %367 = vmatprep.subr.mxu0 0.0
        %368 = vmatpush1.msra.mxu0 0.0
        %369 = vmatprep.subr.mxu0 0.0
        %370 = vmatpush1.msra.mxu0 0.0
        %371 = vmatprep.subr.mxu0 0.0
        %372 = vmatpush1.msra.mxu0 0.0
        %373 = vmatprep.mubr.f32.mxu0 0.0
        %374 = vmatmul.mubr.f32.gmra.mrb[0].mxu0 %v307
        %v375 = vpop.f32.mrb[0].mxu0
        %v376 = vadd.f32 0.0, %v375
        %v377 = vpop.f32.mrb[0].mxu0
        %378 = vdwg.mxu0
        %v379 = vmul.f32 %v299, %v299
        %v380 = vsel %vm305, %v379, 0.0
        %381 = vadd.xlane.f32.xlu0 %v380
        %v382 = vpop.xlane.xlu0 %381
        %v383 = vmax.f32 %v382, 1e-16
        %v384 = vrsqrt.pop %v383
        %v385 = vmul.f32 %v300, %v300
        %v386 = vmul.f32 %v301, %v301
        %v387 = vmul.f32 %v302, %v302
        %v388 = vmul.f32 %v303, %v303
        %v389 = vadd.f32 %v385, %v386
        %v390 = vadd.f32 %v389, %v387
        %v391 = vadd.f32 %v390, %v388
        %v392 = vrot.slane %v391, 4
        %v393 = vadd.f32 %v391, %v392
        %v394 = vrot.slane %v393, 2
        %v395 = vadd.f32 %v393, %v394
        %v396 = vrot.slane %v395, 1
        %v397 = vadd.f32 %v395, %v396
        %v398 = vmax.f32 %v397, 1e-16
        %v399 = vrsqrt.pop %v398
        %v400 = vlaneseq
        %v401 = vand.u32 %v400, 127
        %vm402 = vcmp.lt.s32.totalorder %v401, 8
        %v403 = vmul.f32 %v376, %v384
        %v404 = vmul.f32 %v403, %v399
        %v405 = vsub.f32 %v404, 1.0
        %v406 = vmul.f32 %v405, 10.0
        %v407 = vsel %vm402, 1, 0
        %vm408 = vcmp.eq.s32.totalorder %v407, 1
        %v409 = vsel %vm408, %v406, -1e+30
        %v410 = vadd.f32 %v304, 1e-08
        %v411 = vlog2.pop %v410
        %v412 = vmul.f32 %v411, 0.6931472
        // While loop
        $region41: #{tpu_custom_call.1} parent=31 // loop_pre_header
          _
        $region42: #{tpu_custom_call.1} parent=31 // loop_header
          %s414 = sphi 0, %s754
          %s415 = sphi inf, %s753
          %v416 = vphi 0.0, %v540
          %v417 = vphi 0.0, %v726
          %v418 = vphi %v409, %v740
          %p419 = scmp.lt.s32.totalorder %s414, 50
          %p420 = scmp.ge.f32.partialorder %s415, 1e-06
          %p421 = pnand %p419, %p420
          %p422 = pneg %p421
        $region43: #{tpu_custom_call.1} parent=31 // loop_header_branch
          %424 = sbr.rel (%p421) target = $region47
        $region44: #{tpu_custom_call.1} parent=31 // loop_body
          %425 = vmax.xlane.f32.xlu0 %v418
          %v426 = vpop.xlane.xlu0 %425
          %v427 = vsub.f32 %v418, %v426
          %v428 = vmul.f32 %v427, 1.442695
          %v429 = vpow.pop %v428
          %430 = vadd.xlane.f32.xlu0 %v429
          %v431 = vpop.xlane.xlu0 %430
          %v432 = vlog2.pop %v431
          %v433 = vmul.f32 %v432, 0.6931472
          %v434 = vadd.f32 %v433, %v426
          %v436 = vlaneseq
          %v437 = vshrl.u32 %v436, 7
          %v438 = vsub.s32 0, %v437
          %v439 = vrot.slane %v434, %v438
          %v440 = vlaneseq
          %v441 = vshrl.u32 %v440, 7
          %v442 = vsub.s32 1, %v441
          %v443 = vrot.slane %v434, %v442
          %v444 = vlaneseq
          %v445 = vshrl.u32 %v444, 7
          %v446 = vsub.s32 2, %v445
          %v447 = vrot.slane %v434, %v446
          %v448 = vlaneseq
          %v449 = vshrl.u32 %v448, 7
          %v450 = vsub.s32 3, %v449
          %v451 = vrot.slane %v434, %v450
          %v452 = vlaneseq
          %v453 = vshrl.u32 %v452, 7
          %v454 = vsub.s32 4, %v453
          %v455 = vrot.slane %v434, %v454
          %v456 = vlaneseq
          %v457 = vshrl.u32 %v456, 7
          %v458 = vsub.s32 5, %v457
          %v459 = vrot.slane %v434, %v458
          %v460 = vlaneseq
          %v461 = vshrl.u32 %v460, 7
          %v462 = vsub.s32 6, %v461
          %v463 = vrot.slane %v434, %v462
          %v464 = vlaneseq
          %v465 = vshrl.u32 %v464, 7
          %v466 = vsub.s32 7, %v465
          %v467 = vrot.slane %v434, %v466
          %v468 = vcombine.low %v439, %v443
          %v469 = vcombine.low %v447, %v451
          %v470 = vcombine.low %v455, %v459
          %v471 = vcombine.low %v463, %v467
          %v473 = vunpack.c.l.s4 1966171168
          %v474 = vunpack.c.0.s8 %v473
          %v475 = vlaneseq
          %v476 = vshrl.u32 %v475, 7
          %v477 = vsub.s32 %v474, %v476
          %v478 = vrot.slane %v468, %v477
          %v480 = vunpack.c.l.s4 1966171168
          %v481 = vunpack.c.0.s8 %v480
          %v482 = vlaneseq
          %v483 = vshrl.u32 %v482, 7
          %v484 = vsub.s32 %v481, %v483
          %v485 = vrot.slane %v469, %v484
          %v487 = vunpack.c.l.s4 1966171168
          %v488 = vunpack.c.0.s8 %v487
          %v489 = vlaneseq
          %v490 = vshrl.u32 %v489, 7
          %v491 = vsub.s32 %v488, %v490
          %v492 = vrot.slane %v470, %v491
          %v494 = vunpack.c.l.s4 1966171168
          %v495 = vunpack.c.0.s8 %v494
          %v496 = vlaneseq
          %v497 = vshrl.u32 %v496, 7
          %v498 = vsub.s32 %v495, %v497
          %v499 = vrot.slane %v471, %v498
          %v500 = vcombine.low %v478, %v485
          %v501 = vcombine.low %v492, %v499
          %v503 = vunpack.c.l.s4 1966171168
          %v504 = vunpack.c.0.s8 %v503
          %v505 = vlaneseq
          %v506 = vshrl.u32 %v505, 7
          %v507 = vsub.s32 %v504, %v506
          %v508 = vrot.slane %v500, %v507
          %v510 = vunpack.c.l.s4 1966171168
          %v511 = vunpack.c.0.s8 %v510
          %v512 = vlaneseq
          %v513 = vshrl.u32 %v512, 7
          %v514 = vsub.s32 %v511, %v513
          %v515 = vrot.slane %v501, %v514
          %v516 = vcombine.low %v508, %v515
          %517 = vset.pattern.permute.xlu0 0
          %518 = vperm.xlu0 %517, %v516
          %v519 = vpop.permute.xlu0 %518
          %v520 = vlaneseq
          %v521 = vshrl.u32 %v520, 7
          %v522 = vsub.s32 %v401, %v521
          %v523 = vrot.slane %v519, %v522
          %v525 = vunpack.c.l.s4 1966171168
          %v526 = vunpack.c.0.s8 %v525
          %v527 = vlaneseq
          %v528 = vshrl.u32 %v527, 7
          %v529 = vsub.s32 %v526, %v528
          %v530 = vrot.slane %v523, %v529
          %v532 = vunpack.c.l.s4 1966171168
          %v533 = vunpack.c.0.s8 %v532
          %v534 = vlaneseq
          %v535 = vshrl.u32 %v534, 7
          %v536 = vsub.s32 %v533, %v535
          %v537 = vrot.slane %v530, %v536
          %v539 = vsub.f32 %v412, %v537
          %v540 = vadd.f32 %v416, %v539
          %v542 = vlaneseq
          %v543 = vshrl.u32 %v542, 7
          %v544 = vsub.s32 0, %v543
          %v545 = vrot.slane %v431, %v544
          %v546 = vlaneseq
          %v547 = vshrl.u32 %v546, 7
          %v548 = vsub.s32 1, %v547
          %v549 = vrot.slane %v431, %v548
          %v550 = vlaneseq
          %v551 = vshrl.u32 %v550, 7
          %v552 = vsub.s32 2, %v551
          %v553 = vrot.slane %v431, %v552
          %v554 = vlaneseq
          %v555 = vshrl.u32 %v554, 7
          %v556 = vsub.s32 3, %v555
          %v557 = vrot.slane %v431, %v556
          %v558 = vlaneseq
          %v559 = vshrl.u32 %v558, 7
          %v560 = vsub.s32 4, %v559
          %v561 = vrot.slane %v431, %v560
          %v562 = vlaneseq
          %v563 = vshrl.u32 %v562, 7
          %v564 = vsub.s32 5, %v563
          %v565 = vrot.slane %v431, %v564
          %v566 = vlaneseq
          %v567 = vshrl.u32 %v566, 7
          %v568 = vsub.s32 6, %v567
          %v569 = vrot.slane %v431, %v568
          %v570 = vlaneseq
          %v571 = vshrl.u32 %v570, 7
          %v572 = vsub.s32 7, %v571
          %v573 = vrot.slane %v431, %v572
          %v574 = vcombine.low %v545, %v549
          %v575 = vcombine.low %v553, %v557
          %v576 = vcombine.low %v561, %v565
          %v577 = vcombine.low %v569, %v573
          %v579 = vunpack.c.l.s4 1966171168
          %v580 = vunpack.c.0.s8 %v579
          %v581 = vlaneseq
          %v582 = vshrl.u32 %v581, 7
          %v583 = vsub.s32 %v580, %v582
          %v584 = vrot.slane %v574, %v583
          %v586 = vunpack.c.l.s4 1966171168
          %v587 = vunpack.c.0.s8 %v586
          %v588 = vlaneseq
          %v589 = vshrl.u32 %v588, 7
          %v590 = vsub.s32 %v587, %v589
          %v591 = vrot.slane %v575, %v590
          %v593 = vunpack.c.l.s4 1966171168
          %v594 = vunpack.c.0.s8 %v593
          %v595 = vlaneseq
          %v596 = vshrl.u32 %v595, 7
          %v597 = vsub.s32 %v594, %v596
          %v598 = vrot.slane %v576, %v597
          %v600 = vunpack.c.l.s4 1966171168
          %v601 = vunpack.c.0.s8 %v600
          %v602 = vlaneseq
          %v603 = vshrl.u32 %v602, 7
          %v604 = vsub.s32 %v601, %v603
          %v605 = vrot.slane %v577, %v604
          %v606 = vcombine.low %v584, %v591
          %v607 = vcombine.low %v598, %v605
          %v609 = vunpack.c.l.s4 1966171168
          %v610 = vunpack.c.0.s8 %v609
          %v611 = vlaneseq
          %v612 = vshrl.u32 %v611, 7
          %v613 = vsub.s32 %v610, %v612
          %v614 = vrot.slane %v606, %v613
          %v616 = vunpack.c.l.s4 1966171168
          %v617 = vunpack.c.0.s8 %v616
          %v618 = vlaneseq
          %v619 = vshrl.u32 %v618, 7
          %v620 = vsub.s32 %v617, %v619
          %v621 = vrot.slane %v607, %v620
          %v622 = vcombine.low %v614, %v621
          %623 = vset.pattern.permute.xlu0 0
          %624 = vperm.xlu0 %623, %v622
          %v625 = vpop.permute.xlu0 %624
          %v626 = vlaneseq
          %v627 = vshrl.u32 %v626, 7
          %v628 = vsub.s32 %v401, %v627
          %v629 = vrot.slane %v625, %v628
          %v631 = vunpack.c.l.s4 1966171168
          %v632 = vunpack.c.0.s8 %v631
          %v633 = vlaneseq
          %v634 = vshrl.u32 %v633, 7
          %v635 = vsub.s32 %v632, %v634
          %v636 = vrot.slane %v629, %v635
          %v638 = vunpack.c.l.s4 1966171168
          %v639 = vunpack.c.0.s8 %v638
          %v640 = vlaneseq
          %v641 = vshrl.u32 %v640, 7
          %v642 = vsub.s32 %v639, %v641
          %v643 = vrot.slane %v636, %v642
          %v645 = vrcp.pop %v643
          %v646 = vmul.f32 %v410, %v645
          %vm647 = vcmask 64512
          %v649 = vsel %vm647, %v646, 0
          %651 = vmatprep.subr.mxu0 0.0
          %652 = vmatpush1.msra.mxu0 %v429
          %653 = vmatprep.subr.mxu0 0.0
          %654 = vmatpush1.msra.mxu0 0.0
          %655 = vmatprep.subr.mxu0 0.0
          %656 = vmatpush1.msra.mxu0 0.0
          %657 = vmatprep.subr.mxu0 0.0
          %658 = vmatpush1.msra.mxu0 0.0
          %659 = vmatprep.subr.mxu0 0.0
          %660 = vmatpush1.msra.mxu0 0.0
          %661 = vmatprep.subr.mxu0 0.0
          %662 = vmatpush1.msra.mxu0 0.0
          %663 = vmatprep.subr.mxu0 0.0
          %664 = vmatpush1.msra.mxu0 0.0
          %665 = vmatprep.subr.mxu0 0.0
          %666 = vmatpush1.msra.mxu0 0.0
          %667 = vmatprep.subr.mxu0 0.0
          %668 = vmatpush1.msra.mxu0 0.0
          %669 = vmatprep.subr.mxu0 0.0
          %670 = vmatpush1.msra.mxu0 0.0
          %671 = vmatprep.subr.mxu0 0.0
          %672 = vmatpush1.msra.mxu0 0.0
          %673 = vmatprep.subr.mxu0 0.0
          %674 = vmatpush1.msra.mxu0 0.0
          %675 = vmatprep.subr.mxu0 0.0
          %676 = vmatpush1.msra.mxu0 0.0
          %677 = vmatprep.subr.mxu0 0.0
          %678 = vmatpush1.msra.mxu0 0.0
          %679 = vmatprep.subr.mxu0 0.0
          %680 = vmatpush1.msra.mxu0 0.0
          %681 = vmatprep.subr.mxu0 0.0
          %682 = vmatpush1.msra.mxu0 0.0
          %683 = vmatprep.subr.mxu0 0.0
          %684 = vmatpush1.msra.mxu0 0.0
          %685 = vmatprep.subr.mxu0 0.0
          %686 = vmatpush1.msra.mxu0 0.0
          %687 = vmatprep.subr.mxu0 0.0
          %688 = vmatpush1.msra.mxu0 0.0
          %689 = vmatprep.subr.mxu0 0.0
          %690 = vmatpush1.msra.mxu0 0.0
          %691 = vmatprep.subr.mxu0 0.0
          %692 = vmatpush1.msra.mxu0 0.0
          %693 = vmatprep.subr.mxu0 0.0
          %694 = vmatpush1.msra.mxu0 0.0
          %695 = vmatprep.subr.mxu0 0.0
          %696 = vmatpush1.msra.mxu0 0.0
          %697 = vmatprep.subr.mxu0 0.0
          %698 = vmatpush1.msra.mxu0 0.0
          %699 = vmatprep.subr.mxu0 0.0
          %700 = vmatpush1.msra.mxu0 0.0
          %701 = vmatprep.subr.mxu0 0.0
          %702 = vmatpush1.msra.mxu0 0.0
          %703 = vmatprep.subr.mxu0 0.0
          %704 = vmatpush1.msra.mxu0 0.0
          %705 = vmatprep.subr.mxu0 0.0
          %706 = vmatpush1.msra.mxu0 0.0
          %707 = vmatprep.subr.mxu0 0.0
          %708 = vmatpush1.msra.mxu0 0.0
          %709 = vmatprep.subr.mxu0 0.0
          %710 = vmatpush1.msra.mxu0 0.0
          %711 = vmatprep.subr.mxu0 0.0
          %712 = vmatpush1.msra.mxu0 0.0
          %713 = vmatprep.subr.mxu0 0.0
          %714 = vmatpush1.msra.mxu0 0.0
          %715 = vmatprep.mubr.f32.mxu0 0.0
          %716 = vmatmul.mubr.f32.gmra.mrb[0].mxu0 %v649
          %v717 = vpop.f32.mrb[0].mxu0
          %v718 = vadd.f32 0.0, %v717
          %v719 = vpop.f32.mrb[0].mxu0
          %720 = vdwg.mxu0
          %v721 = vmax.f32 %v718, 1e-38
          %v722 = vlog2.pop %v721
          %v723 = vmul.f32 %v722, 0.6931472
          %v724 = vsub.f32 -2.0794415, %v723
          %v725 = vadd.f32 %v724, %v417
          %v726 = vsel %vm402, %v725, 0.0
          %v727 = vlaneseq
          %v728 = vshrl.u32 %v727, 7
          %v729 = vsub.s32 0, %v728
          %v730 = vrot.slane %v539, %v729
          %732 = vbcast.lane.b32.xlu0 %v730, 256
          %v733 = vpop.permute.xlu0 %732
          %v734 = vadd.f32 %v418, %v733
          %v735 = vsub.f32 %v726, %v417
          %v736 = vlaneseq
          %v737 = vshrl.u32 %v736, 7
          %v738 = vsub.s32 0, %v737
          %v739 = vrot.slane %v735, %v738
          %v740 = vadd.f32 %v734, %v739
          %v741 = vand.u32 2147483647, %v539
          %vm742 = vcmask 57344
          %v743 = vsel %vm742, %v741, 0.0
          %744 = vadd.xlane.f32.xlu0 %v743
          %v745 = vpop.xlane.xlu0 %744
          %v746 = vrot.slane %v745, 4
          %v747 = vadd.f32 %v745, %v746
          %v748 = vrot.slane %v747, 2
          %v749 = vadd.f32 %v747, %v748
          %v750 = vrot.slane %v749, 1
          %v751 = vadd.f32 %v749, %v750
          %s752 = vtos %v751
          %s753 = smul.f32 %s752, 0.1
          %s754 = sadd.s32 %s414, 1
        $region45: #{tpu_custom_call.1} parent=31 // loop_footer
          _
        $region46: #{tpu_custom_call.1} parent=31 // loop_footer_branch
          %413 = sbr.rel target = $region42
        $region47: #{tpu_custom_call.1} parent=31 // loop_exit
          _
        %v755 = vlaneseq
        %v756 = vshrl.u32 %v755, 7
        %v757 = vsub.s32 0, %v756
        %v758 = vrot.slane %v416, %v757
        %760 = vbcast.lane.b32.xlu0 %v758, 256
        %v761 = vpop.permute.xlu0 %760
        %v762 = vadd.f32 %v409, %v761
        %v763 = vlaneseq
        %v764 = vshrl.u32 %v763, 7
        %v765 = vsub.s32 0, %v764
        %v766 = vrot.slane %v417, %v765
        %v767 = vadd.f32 %v762, %v766
        %v768 = vmul.f32 %v767, 1.442695
        %v769 = vpow.pop %v768
        %v770 = vmul.f32 %v409, -0.1
        %v771 = vmul.f32 %v769, %v770
        %v772 = vrot.slane %v771, 4
        %v773 = vadd.f32 %v771, %v772
        %v774 = vrot.slane %v773, 2
        %v775 = vadd.f32 %v773, %v774
        %v776 = vrot.slane %v775, 1
        %v777 = vadd.f32 %v775, %v776
        %778 = vst [vmem:[%s291] sm:$0x1] %v777
        %779 = vst [vmem:[#allocation8] sm:$0xff] %v769
        %780 = vst [vmem:[#allocation10] sm:$0xff] %v770
        %s781 = sand.u32 %s113, 1
        %s782 = scalar_lea.sflag [#allocation4], %s781
        %s783 = sand.u32 %s113, 1
        %s784 = scalar_lea.vmem [#allocation7], %s783
        // Predicated region
        $region48: #{tpu_custom_call.1} parent=31 // pred_check
          %p785 = pneg %p123
        $region49: #{tpu_custom_call.1} parent=31 // pred_check_branch
          %787 = sbr.rel (%p785) target = $region51
        $region50: #{tpu_custom_call.1} parent=31 // pred_region
          %s789 = ssub.s32 16, 16
          %790 = vsyncadd %s782, %s789
          %s791 = smul.addr %s27, 16
          %s792 = scalar_lea.hbm %s3, %s791
          %s794 = sshll.u32 %s784, 4
          %s795 = int_to_ptr.vmem [resolvable:$true] %s794
          %797 = dma.vmem_to_hbm [thread:$0]  %s795, 16, %s792, %s782
        $region51: #{tpu_custom_call.1} parent=31 // pred_fallthru
          _
        // Predicated region
        $region52: #{tpu_custom_call.1} parent=31 // pred_check
          %p798 = pneg %p149
        $region53: #{tpu_custom_call.1} parent=31 // pred_check_branch
          %800 = sbr.rel (%p798) target = $region55
        $region54: #{tpu_custom_call.1} parent=31 // pred_region
          %s802 = ssub.s32 128, 128
          %803 = vsyncadd [#allocation9], %s802
          %s804 = smul.addr %s27, 128
          %s805 = scalar_lea.hbm %s4, %s804
          %s807 = sshll.u32 [#allocation8], 4
          %s808 = int_to_ptr.vmem [resolvable:$true] %s807
          %810 = dma.vmem_to_hbm [thread:$0]  %s808, 128, %s805, [#allocation9]
        $region55: #{tpu_custom_call.1} parent=31 // pred_fallthru
          _
        // Predicated region
        $region56: #{tpu_custom_call.1} parent=31 // pred_check
          %p811 = pneg %p175
        $region57: #{tpu_custom_call.1} parent=31 // pred_check_branch
          %813 = sbr.rel (%p811) target = $region59
        $region58: #{tpu_custom_call.1} parent=31 // pred_region
          %s815 = ssub.s32 128, 128
          %816 = vsyncadd [#allocation9], %s815
          %s817 = smul.addr %s27, 128
          %s818 = scalar_lea.hbm %s5, %s817
          %s820 = sshll.u32 [#allocation10], 4
          %s821 = int_to_ptr.vmem [resolvable:$true] %s820
          %823 = dma.vmem_to_hbm [thread:$0]  %s821, 128, %s818, [#allocation9]
        $region59: #{tpu_custom_call.1} parent=31 // pred_fallthru
          _
        // Predicated region
        $region60: #{tpu_custom_call.1} parent=31 // pred_check
          %p824 = pneg %p149
        $region61: #{tpu_custom_call.1} parent=31 // pred_check_branch
          %826 = sbr.rel (%p824) target = $region63
        $region62: #{tpu_custom_call.1} parent=31 // pred_region
          %827 = dma.done [#allocation9], 128
        $region63: #{tpu_custom_call.1} parent=31 // pred_fallthru
          _
        // Predicated region
        $region64: #{tpu_custom_call.1} parent=31 // pred_check
          %p828 = pneg %p175
        $region65: #{tpu_custom_call.1} parent=31 // pred_check_branch
          %830 = sbr.rel (%p828) target = $region67
        $region66: #{tpu_custom_call.1} parent=31 // pred_region
          %831 = dma.done [#allocation9], 128
        $region67: #{tpu_custom_call.1} parent=31 // pred_fallthru
          _
      $region32: #{tpu_custom_call.1} parent=5 // pred_fallthru
        _
      %p832 = scmp.le.s32.totalorder 2, %s22
      // Predicated region
      $region68: #{tpu_custom_call.1} parent=5 // pred_check
        %p833 = pneg %p832
      $region69: #{tpu_custom_call.1} parent=5 // pred_check_branch
        %835 = sbr.rel (%p833) target = $region71
      $region70: #{tpu_custom_call.1} parent=5 // pred_region
        %s836 = ssub.s32 %s22, 2
        // Predicated region
        $region72: #{tpu_custom_call.1} parent=70 // pred_check
          %p837 = pneg %p129
        $region73: #{tpu_custom_call.1} parent=70 // pred_check_branch
          %839 = sbr.rel (%p837) target = $region75
        $region74: #{tpu_custom_call.1} parent=70 // pred_region
          %s840 = sand.u32 %s114, 1
          %s841 = scalar_lea.sflag [#allocation4], %s840
          %s842 = sand.u32 %s114, 1
          %s843 = scalar_lea.vmem [#allocation7], %s842
          %844 = dma.done %s841, 16
        $region75: #{tpu_custom_call.1} parent=70 // pred_fallthru
          _
      $region71: #{tpu_custom_call.1} parent=5 // pred_fallthru
        _
    $region6: #{tpu_custom_call.1} parent=1 // loop_footer
      %s26 = sadd.s32 1, %s22
    $region7: #{tpu_custom_call.1} parent=1 // loop_footer_branch
      %21 = sbr.rel target = $region3
    $region8: #{tpu_custom_call.1} parent=1 // loop_exit
      _
    %845 = vsyncpa [#allocation3], 1
    %s846 = scalar_lea.sflag [#allocation3], 1
    %847 = vsyncpa %s846, 1
    %848 = vsyncpa [#allocation6], 1
    %s849 = scalar_lea.sflag [#allocation6], 1
    %850 = vsyncpa %s849, 1
    %851 = vsyncpa [#allocation4], 1
    %s852 = scalar_lea.sflag [#allocation4], 1
    %853 = vsyncpa %s852, 1
    %854 = vsyncpa [#allocation9], 1

// kernel: tpu_custom_call.1
$region0: #{tpu_custom_call.1}
  #allocation0 [shape = 'u32[]', space=smem, size = 0x4, offset = 0x4, fixed_abs, tag = 'smem constant byte address 0x4 - core index']
  #allocation1 [shape = 'u32[144,128]{1,0:T(1,128)}', space=vmem, size = 0x12000, scoped, tag = 'internal scratch']
  %s0 = inlined_call_operand.hbm [shape: f32[2,8,32], index: 0, kind: input, shape index: {}]
  %s1 = inlined_call_operand.hbm [shape: f32[2,32,128], index: 1, kind: input, shape index: {}]
  %s2 = inlined_call_operand.vmem [shape: f32[2,1,8], index: 2, kind: input, shape index: {}]
  %s3 = inlined_call_operand.hbm [shape: f32[2,1,128], index: 3, kind: output, shape index: {0}]
  %s4 = inlined_call_operand.hbm [shape: f32[2,8,128], index: 4, kind: output, shape index: {1}]
  %s5 = inlined_call_operand.hbm [shape: f32[2,8,128], index: 5, kind: output, shape index: {2}]
  %6 = xla_tuple %s3, %s4, %s5
  %s7 = sld [smem:[#allocation0]]
  $region76: #{tpu_custom_call.1} parent=0
    _
  %s9 = ssub.s32 1, %s7
  %s10 = scalar_select 0, %s9, %s7
  $region1: #{tpu_custom_call.1} parent=0
    #allocation2 [shape = 'u8[8192]{0}', space=vmem, size = 0x2000, scoped, tag = 'input window, operand 0']
    #allocation3 [shape = 's32[2]{0}', space=sflag, size = 0x8, scoped, tag = 'scoped memory for tpu_custom_call.1']
    #allocation4 [shape = 's32[2]{0}', space=sflag, size = 0x8, scoped, tag = 'scoped memory for tpu_custom_call.1']
    #allocation5 [shape = 'u8[32768]{0}', space=vmem, size = 0x8000, scoped, tag = 'input window, operand 1']
    #allocation6 [shape = 's32[2]{0}', space=sflag, size = 0x8, scoped, tag = 'scoped memory for tpu_custom_call.1']
    #allocation7 [shape = 'u8[1024]{0}', space=vmem, size = 0x400, scoped, tag = 'output window, operand 0']
    #allocation8 [shape = 'u8[8192]{0}', space=vmem, size = 0x2000, scoped, tag = 'output window, operand 1']
    #allocation9 [shape = 's32[2]{0}', space=sflag, size = 0x8, scoped, tag = 'scoped memory for tpu_custom_call.1']
    #allocation10 [shape = 'u8[8192]{0}', space=vmem, size = 0x2000, scoped, tag = 'output window, operand 2']
    %11 = vsyncpa [#allocation3], 0
    %s12 = scalar_lea.sflag [#allocation3], 1
    %13 = vsyncpa %s12, 0
    %14 = vsyncpa [#allocation6], 0
    %s15 = scalar_lea.sflag [#allocation6], 1
    %16 = vsyncpa %s15, 0
    %17 = vsyncpa [#allocation4], 0
    %s18 = scalar_lea.sflag [#allocation4], 1
    %19 = vsyncpa %s18, 0
    %20 = vsyncpa [#allocation9], 0
    %s21 = scalar_lea.sflag [#allocation9], 1
    %22 = vsyncpa %s21, 0
    loop: start=0, step=1, limit=4
    $region2: #{tpu_custom_call.1} parent=1 // loop_pre_header
      _
    $region3: #{tpu_custom_call.1} parent=1 // loop_header
      %s24 = sphi 0, %s28
      %p25 = scmp.ge.s32.totalorder %s24, 4
      %s34 = sphi 0, %s36
      %s37 = sphi 0, %s34
      %s38 = sphi 0, %s37
      %s54 = sphi 0, %s38
      %s60 = sphi 0, %s62
      %s63 = sphi 0, %s60
      %s64 = sphi 0, %s63
      %s80 = sphi 0, %s64
      %s86 = sphi 0, %s88
      %s89 = sphi 0, %s86
      %s90 = sphi 0, %s89
      %s106 = sphi 0, %s90
      %s112 = sphi 0, %s114
      %s115 = sphi 0, %s112
      %s116 = sphi 0, %s115
      %s132 = sphi 0, %s116
      %s138 = sphi 0, %s140
      %s141 = sphi 0, %s138
      %s142 = sphi 0, %s141
      %s158 = sphi 0, %s142
      %s164 = sphi 0, %s166
      %s167 = sphi 0, %s164
      %s168 = sphi 0, %s167
      %s184 = sphi 0, %s168
    $region4: #{tpu_custom_call.1} parent=1 // loop_header_branch
      %27 = sbr.rel (%p25) target = $region8
    $region5: #{tpu_custom_call.1} parent=1 // loop_body
      %s29 = ssub.s32 %s24, 1
      %s30 = ssub.s32 %s24, 2
      %s31 = sadd.s32 %s24, 1
      %s32 = ssub.s32 %s24, %s31
      %p33 = scmp.eq.s32.totalorder %s32, 0
      %s35 = sadd.s32 %s34, 1
      %s36 = scalar_select %p33, %s34, %s35
      %p39 = pneg %p33
      %p40 = scmp.eq.s32.totalorder %s24, 1
      %p41 = por %p39, %p40
      %p42 = scmp.ne.s32.totalorder %s34, %s37
      %p43 = scmp.eq.s32.totalorder %s24, 0
      %p44 = por %p42, %p43
      %p45 = scmp.ne.s32.totalorder %s34, %s37
      %p46 = scmp.eq.s32.totalorder %s29, 1
      %p47 = por %p45, %p46
      %p48 = scmp.ne.s32.totalorder %s37, %s38
      %p49 = scmp.eq.s32.totalorder %s29, 0
      %p50 = por %p48, %p49
      %p51 = scmp.ne.s32.totalorder %s37, %s38
      %p52 = scmp.eq.s32.totalorder %s30, 1
      %p53 = por %p51, %p52
      %p55 = scmp.ne.s32.totalorder %s38, %s54
      %p56 = scmp.eq.s32.totalorder %s30, 0
      %p57 = por %p55, %p56
      %s58 = ssub.s32 %s24, %s31
      %p59 = scmp.eq.s32.totalorder %s58, 0
      %s61 = sadd.s32 %s60, 1
      %s62 = scalar_select %p59, %s60, %s61
      %p65 = pneg %p59
      %p66 = scmp.eq.s32.totalorder %s24, 1
      %p67 = por %p65, %p66
      %p68 = scmp.ne.s32.totalorder %s60, %s63
      %p69 = scmp.eq.s32.totalorder %s24, 0
      %p70 = por %p68, %p69
      %p71 = scmp.ne.s32.totalorder %s60, %s63
      %p72 = scmp.eq.s32.totalorder %s29, 1
      %p73 = por %p71, %p72
      %p74 = scmp.ne.s32.totalorder %s63, %s64
      %p75 = scmp.eq.s32.totalorder %s29, 0
      %p76 = por %p74, %p75
      %p77 = scmp.ne.s32.totalorder %s63, %s64
      %p78 = scmp.eq.s32.totalorder %s30, 1
      %p79 = por %p77, %p78
      %p81 = scmp.ne.s32.totalorder %s64, %s80
      %p82 = scmp.eq.s32.totalorder %s30, 0
      %p83 = por %p81, %p82
      %s84 = ssub.s32 %s24, %s31
      %p85 = scmp.eq.s32.totalorder %s84, 0
      %s87 = sadd.s32 %s86, 1
      %s88 = scalar_select %p85, %s86, %s87
      %p91 = pneg %p85
      %p92 = scmp.eq.s32.totalorder %s24, 1
      %p93 = por %p91, %p92
      %p94 = scmp.ne.s32.totalorder %s86, %s89
      %p95 = scmp.eq.s32.totalorder %s24, 0
      %p96 = por %p94, %p95
      %p97 = scmp.ne.s32.totalorder %s86, %s89
      %p98 = scmp.eq.s32.totalorder %s29, 1
      %p99 = por %p97, %p98
      %p100 = scmp.ne.s32.totalorder %s89, %s90
      %p101 = scmp.eq.s32.totalorder %s29, 0
      %p102 = por %p100, %p101
      %p103 = scmp.ne.s32.totalorder %s89, %s90
      %p104 = scmp.eq.s32.totalorder %s30, 1
      %p105 = por %p103, %p104
      %p107 = scmp.ne.s32.totalorder %s90, %s106
      %p108 = scmp.eq.s32.totalorder %s30, 0
      %p109 = por %p107, %p108
      %s110 = ssub.s32 %s24, %s31
      %p111 = scmp.eq.s32.totalorder %s110, 0
      %s113 = sadd.s32 %s112, 1
      %s114 = scalar_select %p111, %s112, %s113
      %p117 = pneg %p111
      %p118 = scmp.eq.s32.totalorder %s24, 1
      %p119 = por %p117, %p118
      %p120 = scmp.ne.s32.totalorder %s112, %s115
      %p121 = scmp.eq.s32.totalorder %s24, 0
      %p122 = por %p120, %p121
      %p123 = scmp.ne.s32.totalorder %s112, %s115
      %p124 = scmp.eq.s32.totalorder %s29, 1
      %p125 = por %p123, %p124
      %p126 = scmp.ne.s32.totalorder %s115, %s116
      %p127 = scmp.eq.s32.totalorder %s29, 0
      %p128 = por %p126, %p127
      %p129 = scmp.ne.s32.totalorder %s115, %s116
      %p130 = scmp.eq.s32.totalorder %s30, 1
      %p131 = por %p129, %p130
      %p133 = scmp.ne.s32.totalorder %s116, %s132
      %p134 = scmp.eq.s32.totalorder %s30, 0
      %p135 = por %p133, %p134
      %s136 = ssub.s32 %s24, %s31
      %p137 = scmp.eq.s32.totalorder %s136, 0
      %s139 = sadd.s32 %s138, 1
      %s140 = scalar_select %p137, %s138, %s139
      %p143 = pneg %p137
      %p144 = scmp.eq.s32.totalorder %s24, 1
      %p145 = por %p143, %p144
      %p146 = scmp.ne.s32.totalorder %s138, %s141
      %p147 = scmp.eq.s32.totalorder %s24, 0
      %p148 = por %p146, %p147
      %p149 = scmp.ne.s32.totalorder %s138, %s141
      %p150 = scmp.eq.s32.totalorder %s29, 1
      %p151 = por %p149, %p150
      %p152 = scmp.ne.s32.totalorder %s141, %s142
      %p153 = scmp.eq.s32.totalorder %s29, 0
      %p154 = por %p152, %p153
      %p155 = scmp.ne.s32.totalorder %s141, %s142
      %p156 = scmp.eq.s32.totalorder %s30, 1
      %p157 = por %p155, %p156
      %p159 = scmp.ne.s32.totalorder %s142, %s158
      %p160 = scmp.eq.s32.totalorder %s30, 0
      %p161 = por %p159, %p160
      %s162 = ssub.s32 %s24, %s31
      %p163 = scmp.eq.s32.totalorder %s162, 0
      %s165 = sadd.s32 %s164, 1
      %s166 = scalar_select %p163, %s164, %s165
      %p169 = pneg %p163
      %p170 = scmp.eq.s32.totalorder %s24, 1
      %p171 = por %p169, %p170
      %p172 = scmp.ne.s32.totalorder %s164, %s167
      %p173 = scmp.eq.s32.totalorder %s24, 0
      %p174 = por %p172, %p173
      %p175 = scmp.ne.s32.totalorder %s164, %s167
      %p176 = scmp.eq.s32.totalorder %s29, 1
      %p177 = por %p175, %p176
      %p178 = scmp.ne.s32.totalorder %s167, %s168
      %p179 = scmp.eq.s32.totalorder %s29, 0
      %p180 = por %p178, %p179
      %p181 = scmp.ne.s32.totalorder %s167, %s168
      %p182 = scmp.eq.s32.totalorder %s30, 1
      %p183 = por %p181, %p182
      %p185 = scmp.ne.s32.totalorder %s168, %s184
      %p186 = scmp.eq.s32.totalorder %s30, 0
      %p187 = por %p185, %p186
      %p188 = scmp.le.s32.totalorder 1, %s24
      %p189 = scmp.lt.s32.totalorder %s24, 3
      %p190 = pnand %p188, %p189
      %p191 = pneg %p190
      // Predicated region
      $region9: #{tpu_custom_call.1} parent=5 // pred_check
        _
      $region10: #{tpu_custom_call.1} parent=5 // pred_check_branch
        %193 = sbr.rel (%p190) target = $region12
      $region11: #{tpu_custom_call.1} parent=5 // pred_region
        %s194 = ssub.s32 %s24, 1
      $region12: #{tpu_custom_call.1} parent=5 // pred_fallthru
        _
      %p195 = scmp.lt.s32.totalorder %s24, 2
      // Predicated region
      $region13: #{tpu_custom_call.1} parent=5 // pred_check
        %p196 = pneg %p195
      $region14: #{tpu_custom_call.1} parent=5 // pred_check_branch
        %198 = sbr.rel (%p196) target = $region16
      $region15: #{tpu_custom_call.1} parent=5 // pred_region
        // Predicated region
        $region17: #{tpu_custom_call.1} parent=15 // pred_check
          %p199 = pneg %p44
        $region18: #{tpu_custom_call.1} parent=15 // pred_check_branch
          %201 = sbr.rel (%p199) target = $region20
        $region19: #{tpu_custom_call.1} parent=15 // pred_region
          %s202 = sand.u32 %s34, 1
          %s203 = scalar_lea.sflag [#allocation3], %s202
          %s204 = sand.u32 %s34, 1
          %s205 = smul.addr %s204, 8
          %s206 = scalar_lea.vmem [#allocation2], %s205
          %s208 = ssub.s32 128, 128
          %209 = vsyncadd %s203, %s208
          %s210 = smul.addr %s24, 128
          %s211 = scalar_lea.hbm %s0, %s210
          %s213 = sshll.u32 %s206, 4
          %s214 = int_to_ptr.vmem [resolvable:$true] %s213
          %216 = dma.hbm_to_vmem [thread:$0]  %s211, 128, %s214, %s203
        $region20: #{tpu_custom_call.1} parent=15 // pred_fallthru
          _
        // Predicated region
        $region21: #{tpu_custom_call.1} parent=15 // pred_check
          %p217 = pneg %p70
        $region22: #{tpu_custom_call.1} parent=15 // pred_check_branch
          %219 = sbr.rel (%p217) target = $region24
        $region23: #{tpu_custom_call.1} parent=15 // pred_region
          %s220 = sand.u32 %s60, 1
          %s221 = scalar_lea.sflag [#allocation6], %s220
          %s222 = sand.u32 %s60, 1
          %s223 = smul.addr %s222, 32
          %s224 = scalar_lea.vmem [#allocation5], %s223
          %s226 = ssub.s32 512, 512
          %227 = vsyncadd %s221, %s226
          %s228 = smul.addr %s24, 4
          %s229 = smul.addr %s228, 128
          %s230 = scalar_lea.hbm %s1, %s229
          %s231 = sshll.u32 %s224, 4
          %s232 = int_to_ptr.vmem [resolvable:$true] %s231
          %237 = dma.hbm_to_vmem [thread:$0]  %s230, 512, %s232, %s221, 128, 128, 8
        $region24: #{tpu_custom_call.1} parent=15 // pred_fallthru
          _
        // Predicated region
        $region25: #{tpu_custom_call.1} parent=15 // pred_check
          %p238 = pneg %p96
        $region26: #{tpu_custom_call.1} parent=15 // pred_check_branch
          %240 = sbr.rel (%p238) target = $region28
        $region27: #{tpu_custom_call.1} parent=15 // pred_region
          %p241 = scmp.lt.s32.totalorder %s24, 1
          %s242 = scalar_select %p241, %s24, 1
          %s243 = scalar_lea.vmem %s2, %s242
        $region28: #{tpu_custom_call.1} parent=15 // pred_fallthru
          _
      $region16: #{tpu_custom_call.1} parent=5 // pred_fallthru
        _
      %p244 = scmp.le.s32.totalorder 1, %s24
      %p245 = scmp.lt.s32.totalorder %s24, 3
      %p246 = pnand %p244, %p245
      %p247 = pneg %p246
      // Predicated region
      $region29: #{tpu_custom_call.1} parent=5 // pred_check
        _
      $region30: #{tpu_custom_call.1} parent=5 // pred_check_branch
        %249 = sbr.rel (%p246) target = $region32
      $region31: #{tpu_custom_call.1} parent=5 // pred_region
        %s250 = ssub.s32 %s24, 1
        %s251 = sand.u32 %s37, 1
        %s252 = scalar_lea.sflag [#allocation3], %s251
        %s253 = sand.u32 %s37, 1
        %s254 = smul.addr %s253, 8
        %s255 = scalar_lea.vmem [#allocation2], %s254
        // Predicated region
        $region33: #{tpu_custom_call.1} parent=31 // pred_check
          %p256 = pneg %p50
        $region34: #{tpu_custom_call.1} parent=31 // pred_check_branch
          %258 = sbr.rel (%p256) target = $region36
        $region35: #{tpu_custom_call.1} parent=31 // pred_region
          %259 = dma.done %s252, 128
        $region36: #{tpu_custom_call.1} parent=31 // pred_fallthru
          _
        %s260 = sand.u32 %s63, 1
        %s261 = scalar_lea.sflag [#allocation6], %s260
        %s262 = sand.u32 %s63, 1
        %s263 = smul.addr %s262, 32
        %s264 = scalar_lea.vmem [#allocation5], %s263
        // Predicated region
        $region37: #{tpu_custom_call.1} parent=31 // pred_check
          %p265 = pneg %p76
        $region38: #{tpu_custom_call.1} parent=31 // pred_check_branch
          %267 = sbr.rel (%p265) target = $region40
        $region39: #{tpu_custom_call.1} parent=31 // pred_region
          %268 = dma.done %s261, 512
        $region40: #{tpu_custom_call.1} parent=31 // pred_fallthru
          _
        %s269 = sand.u32 %s37, 1
        %s270 = scalar_lea.sflag [#allocation3], %s269
        %s271 = sand.u32 %s37, 1
        %s272 = smul.addr %s271, 8
        %s273 = scalar_lea.vmem [#allocation2], %s272
        %p274 = pneg %p50
        %p275 = pneg %p47
        %s276 = sand.u32 %s63, 1
        %s277 = scalar_lea.sflag [#allocation6], %s276
        %s278 = sand.u32 %s63, 1
        %s279 = smul.addr %s278, 32
        %s280 = scalar_lea.vmem [#allocation5], %s279
        %p281 = pneg %p76
        %p282 = pneg %p73
        %p283 = scmp.lt.s32.totalorder %s29, 1
        %s284 = scalar_select %p283, %s29, 1
        %s285 = scalar_lea.vmem %s2, %s284
        %p286 = pneg %p102
        %p287 = pneg %p99
        %p288 = pneg %p128
        %p289 = pneg %p125
        %s290 = sand.u32 %s115, 1
        %s291 = scalar_lea.sflag [#allocation4], %s290
        %s292 = sand.u32 %s115, 1
        %s293 = scalar_lea.vmem [#allocation7], %s292
        %p294 = pneg %p154
        %p295 = pneg %p151
        %s296 = sand.u32 %s29, 1
        %s297 = scalar_lea.sflag [#allocation9], %s296
        %s298 = sand.u32 %s141, 1
        %s299 = smul.addr %s298, 8
        %s300 = scalar_lea.vmem [#allocation8], %s299
        %p301 = pneg %p180
        %p302 = pneg %p177
        %s303 = sand.u32 %s29, 1
        %s304 = scalar_lea.sflag [#allocation9], %s303
        %s305 = sand.u32 %s167, 1
        %s306 = smul.addr %s305, 8
        %s307 = scalar_lea.vmem [#allocation10], %s306
        %p308 = scmp.lt.s32.totalorder %s29, 1
        %s309 = scalar_select %p308, %s29, 1
        %s310 = scalar_lea.vmem %s2, %s309
        %v311 = vld [vmem:[%s255] sm:$0xff]
        %v312 = vld [vmem:[%s264] sm:$0xff]
        %v313 = vld [vmem:[%s264 + $0x8] sm:$0xff]
        %v314 = vld [vmem:[%s264 + $0x10] sm:$0xff]
        %v315 = vld [vmem:[%s264 + $0x18] sm:$0xff]
        %v316 = vld [vmem:[%s310] sm:$0x1]
        %vm317 = vcmask 261120
        %v319 = vsel %vm317, %v311, 0
        %321 = vmatprep.subr.mxu0 0.0
        %322 = vmatpush1.msra.mxu0 %v312
        %323 = vmatprep.subr.mxu0 0.0
        %324 = vmatpush1.msra.mxu0 %v313
        %325 = vmatprep.subr.mxu0 0.0
        %326 = vmatpush1.msra.mxu0 %v314
        %327 = vmatprep.subr.mxu0 0.0
        %328 = vmatpush1.msra.mxu0 %v315
        %329 = vmatprep.subr.mxu0 0.0
        %330 = vmatpush1.msra.mxu0 0.0
        %331 = vmatprep.subr.mxu0 0.0
        %332 = vmatpush1.msra.mxu0 0.0
        %333 = vmatprep.subr.mxu0 0.0
        %334 = vmatpush1.msra.mxu0 0.0
        %335 = vmatprep.subr.mxu0 0.0
        %336 = vmatpush1.msra.mxu0 0.0
        %337 = vmatprep.subr.mxu0 0.0
        %338 = vmatpush1.msra.mxu0 0.0
        %339 = vmatprep.subr.mxu0 0.0
        %340 = vmatpush1.msra.mxu0 0.0
        %341 = vmatprep.subr.mxu0 0.0
        %342 = vmatpush1.msra.mxu0 0.0
        %343 = vmatprep.subr.mxu0 0.0
        %344 = vmatpush1.msra.mxu0 0.0
        %345 = vmatprep.subr.mxu0 0.0
        %346 = vmatpush1.msra.mxu0 0.0
        %347 = vmatprep.subr.mxu0 0.0
        %348 = vmatpush1.msra.mxu0 0.0
        %349 = vmatprep.subr.mxu0 0.0
        %350 = vmatpush1.msra.mxu0 0.0
        %351 = vmatprep.subr.mxu0 0.0
        %352 = vmatpush1.msra.mxu0 0.0
        %353 = vmatprep.subr.mxu0 0.0
        %354 = vmatpush1.msra.mxu0 0.0
        %355 = vmatprep.subr.mxu0 0.0
        %356 = vmatpush1.msra.mxu0 0.0
        %357 = vmatprep.subr.mxu0 0.0
        %358 = vmatpush1.msra.mxu0 0.0
        %359 = vmatprep.subr.mxu0 0.0
        %360 = vmatpush1.msra.mxu0 0.0
        %361 = vmatprep.subr.mxu0 0.0
        %362 = vmatpush1.msra.mxu0 0.0
        %363 = vmatprep.subr.mxu0 0.0
        %364 = vmatpush1.msra.mxu0 0.0
        %365 = vmatprep.subr.mxu0 0.0
        %366 = vmatpush1.msra.mxu0 0.0
        %367 = vmatprep.subr.mxu0 0.0
        %368 = vmatpush1.msra.mxu0 0.0
        %369 = vmatprep.subr.mxu0 0.0
        %370 = vmatpush1.msra.mxu0 0.0
        %371 = vmatprep.subr.mxu0 0.0
        %372 = vmatpush1.msra.mxu0 0.0
        %373 = vmatprep.subr.mxu0 0.0
        %374 = vmatpush1.msra.mxu0 0.0
        %375 = vmatprep.subr.mxu0 0.0
        %376 = vmatpush1.msra.mxu0 0.0
        %377 = vmatprep.subr.mxu0 0.0
        %378 = vmatpush1.msra.mxu0 0.0
        %379 = vmatprep.subr.mxu0 0.0
        %380 = vmatpush1.msra.mxu0 0.0
        %381 = vmatprep.subr.mxu0 0.0
        %382 = vmatpush1.msra.mxu0 0.0
        %383 = vmatprep.subr.mxu0 0.0
        %384 = vmatpush1.msra.mxu0 0.0
        %385 = vmatprep.mubr.f32.mxu0 0.0
        %386 = vmatmul.mubr.f32.gmra.mrb[0].mxu0 %v319
        %v387 = vpop.f32.mrb[0].mxu0
        %v388 = vadd.f32 0.0, %v387
        %v389 = vpop.f32.mrb[0].mxu0
        %390 = vdwg.mxu0
        %v391 = vmul.f32 %v311, %v311
        %v392 = vsel %vm317, %v391, 0.0
        %393 = vadd.xlane.f32.xlu0 %v392
        %v394 = vpop.xlane.xlu0 %393
        %v395 = vmax.f32 %v394, 1e-16
        %v396 = vrsqrt.pop %v395
        %v397 = vmul.f32 %v312, %v312
        %v398 = vmul.f32 %v313, %v313
        %v399 = vmul.f32 %v314, %v314
        %v400 = vmul.f32 %v315, %v315
        %v401 = vadd.f32 %v397, %v398
        %v402 = vadd.f32 %v401, %v399
        %v403 = vadd.f32 %v402, %v400
        %v404 = vrot.slane %v403, 4
        %v405 = vadd.f32 %v403, %v404
        %v406 = vrot.slane %v405, 2
        %v407 = vadd.f32 %v405, %v406
        %v408 = vrot.slane %v407, 1
        %v409 = vadd.f32 %v407, %v408
        %v410 = vmax.f32 %v409, 1e-16
        %v411 = vrsqrt.pop %v410
        %v412 = vlaneseq
        %v413 = vand.u32 %v412, 127
        %vm414 = vcmp.lt.s32.totalorder %v413, 8
        %v415 = vmul.f32 %v388, %v396
        %v416 = vmul.f32 %v415, %v411
        %v417 = vsub.f32 %v416, 1.0
        %v418 = vmul.f32 %v417, 10.0
        %v419 = vsel %vm414, 1, 0
        %vm420 = vcmp.eq.s32.totalorder %v419, 1
        %v421 = vsel %vm420, %v418, -1e+30
        %v422 = vadd.f32 %v316, 1e-08
        %v423 = vlog2.pop %v422
        %v424 = vmul.f32 %v423, 0.6931472
        // While loop
        $region41: #{tpu_custom_call.1} parent=31 // loop_pre_header
          _
        $region42: #{tpu_custom_call.1} parent=31 // loop_header
          %s426 = sphi 0, %s766
          %s427 = sphi inf, %s765
          %v428 = vphi 0.0, %v552
          %v429 = vphi 0.0, %v738
          %v430 = vphi %v421, %v752
          %p431 = scmp.lt.s32.totalorder %s426, 50
          %p432 = scmp.ge.f32.partialorder %s427, 1e-06
          %p433 = pnand %p431, %p432
          %p434 = pneg %p433
        $region43: #{tpu_custom_call.1} parent=31 // loop_header_branch
          %436 = sbr.rel (%p433) target = $region47
        $region44: #{tpu_custom_call.1} parent=31 // loop_body
          %437 = vmax.xlane.f32.xlu0 %v430
          %v438 = vpop.xlane.xlu0 %437
          %v439 = vsub.f32 %v430, %v438
          %v440 = vmul.f32 %v439, 1.442695
          %v441 = vpow.pop %v440
          %442 = vadd.xlane.f32.xlu0 %v441
          %v443 = vpop.xlane.xlu0 %442
          %v444 = vlog2.pop %v443
          %v445 = vmul.f32 %v444, 0.6931472
          %v446 = vadd.f32 %v445, %v438
          %v448 = vlaneseq
          %v449 = vshrl.u32 %v448, 7
          %v450 = vsub.s32 0, %v449
          %v451 = vrot.slane %v446, %v450
          %v452 = vlaneseq
          %v453 = vshrl.u32 %v452, 7
          %v454 = vsub.s32 1, %v453
          %v455 = vrot.slane %v446, %v454
          %v456 = vlaneseq
          %v457 = vshrl.u32 %v456, 7
          %v458 = vsub.s32 2, %v457
          %v459 = vrot.slane %v446, %v458
          %v460 = vlaneseq
          %v461 = vshrl.u32 %v460, 7
          %v462 = vsub.s32 3, %v461
          %v463 = vrot.slane %v446, %v462
          %v464 = vlaneseq
          %v465 = vshrl.u32 %v464, 7
          %v466 = vsub.s32 4, %v465
          %v467 = vrot.slane %v446, %v466
          %v468 = vlaneseq
          %v469 = vshrl.u32 %v468, 7
          %v470 = vsub.s32 5, %v469
          %v471 = vrot.slane %v446, %v470
          %v472 = vlaneseq
          %v473 = vshrl.u32 %v472, 7
          %v474 = vsub.s32 6, %v473
          %v475 = vrot.slane %v446, %v474
          %v476 = vlaneseq
          %v477 = vshrl.u32 %v476, 7
          %v478 = vsub.s32 7, %v477
          %v479 = vrot.slane %v446, %v478
          %v480 = vcombine.low %v451, %v455
          %v481 = vcombine.low %v459, %v463
          %v482 = vcombine.low %v467, %v471
          %v483 = vcombine.low %v475, %v479
          %v485 = vunpack.c.l.s4 1966171168
          %v486 = vunpack.c.0.s8 %v485
          %v487 = vlaneseq
          %v488 = vshrl.u32 %v487, 7
          %v489 = vsub.s32 %v486, %v488
          %v490 = vrot.slane %v480, %v489
          %v492 = vunpack.c.l.s4 1966171168
          %v493 = vunpack.c.0.s8 %v492
          %v494 = vlaneseq
          %v495 = vshrl.u32 %v494, 7
          %v496 = vsub.s32 %v493, %v495
          %v497 = vrot.slane %v481, %v496
          %v499 = vunpack.c.l.s4 1966171168
          %v500 = vunpack.c.0.s8 %v499
          %v501 = vlaneseq
          %v502 = vshrl.u32 %v501, 7
          %v503 = vsub.s32 %v500, %v502
          %v504 = vrot.slane %v482, %v503
          %v506 = vunpack.c.l.s4 1966171168
          %v507 = vunpack.c.0.s8 %v506
          %v508 = vlaneseq
          %v509 = vshrl.u32 %v508, 7
          %v510 = vsub.s32 %v507, %v509
          %v511 = vrot.slane %v483, %v510
          %v512 = vcombine.low %v490, %v497
          %v513 = vcombine.low %v504, %v511
          %v515 = vunpack.c.l.s4 1966171168
          %v516 = vunpack.c.0.s8 %v515
          %v517 = vlaneseq
          %v518 = vshrl.u32 %v517, 7
          %v519 = vsub.s32 %v516, %v518
          %v520 = vrot.slane %v512, %v519
          %v522 = vunpack.c.l.s4 1966171168
          %v523 = vunpack.c.0.s8 %v522
          %v524 = vlaneseq
          %v525 = vshrl.u32 %v524, 7
          %v526 = vsub.s32 %v523, %v525
          %v527 = vrot.slane %v513, %v526
          %v528 = vcombine.low %v520, %v527
          %529 = vset.pattern.permute.xlu0 0
          %530 = vperm.xlu0 %529, %v528
          %v531 = vpop.permute.xlu0 %530
          %v532 = vlaneseq
          %v533 = vshrl.u32 %v532, 7
          %v534 = vsub.s32 %v413, %v533
          %v535 = vrot.slane %v531, %v534
          %v537 = vunpack.c.l.s4 1966171168
          %v538 = vunpack.c.0.s8 %v537
          %v539 = vlaneseq
          %v540 = vshrl.u32 %v539, 7
          %v541 = vsub.s32 %v538, %v540
          %v542 = vrot.slane %v535, %v541
          %v544 = vunpack.c.l.s4 1966171168
          %v545 = vunpack.c.0.s8 %v544
          %v546 = vlaneseq
          %v547 = vshrl.u32 %v546, 7
          %v548 = vsub.s32 %v545, %v547
          %v549 = vrot.slane %v542, %v548
          %v551 = vsub.f32 %v424, %v549
          %v552 = vadd.f32 %v428, %v551
          %v554 = vlaneseq
          %v555 = vshrl.u32 %v554, 7
          %v556 = vsub.s32 0, %v555
          %v557 = vrot.slane %v443, %v556
          %v558 = vlaneseq
          %v559 = vshrl.u32 %v558, 7
          %v560 = vsub.s32 1, %v559
          %v561 = vrot.slane %v443, %v560
          %v562 = vlaneseq
          %v563 = vshrl.u32 %v562, 7
          %v564 = vsub.s32 2, %v563
          %v565 = vrot.slane %v443, %v564
          %v566 = vlaneseq
          %v567 = vshrl.u32 %v566, 7
          %v568 = vsub.s32 3, %v567
          %v569 = vrot.slane %v443, %v568
          %v570 = vlaneseq
          %v571 = vshrl.u32 %v570, 7
          %v572 = vsub.s32 4, %v571
          %v573 = vrot.slane %v443, %v572
          %v574 = vlaneseq
          %v575 = vshrl.u32 %v574, 7
          %v576 = vsub.s32 5, %v575
          %v577 = vrot.slane %v443, %v576
          %v578 = vlaneseq
          %v579 = vshrl.u32 %v578, 7
          %v580 = vsub.s32 6, %v579
          %v581 = vrot.slane %v443, %v580
          %v582 = vlaneseq
          %v583 = vshrl.u32 %v582, 7
          %v584 = vsub.s32 7, %v583
          %v585 = vrot.slane %v443, %v584
          %v586 = vcombine.low %v557, %v561
          %v587 = vcombine.low %v565, %v569
          %v588 = vcombine.low %v573, %v577
          %v589 = vcombine.low %v581, %v585
          %v591 = vunpack.c.l.s4 1966171168
          %v592 = vunpack.c.0.s8 %v591
          %v593 = vlaneseq
          %v594 = vshrl.u32 %v593, 7
          %v595 = vsub.s32 %v592, %v594
          %v596 = vrot.slane %v586, %v595
          %v598 = vunpack.c.l.s4 1966171168
          %v599 = vunpack.c.0.s8 %v598
          %v600 = vlaneseq
          %v601 = vshrl.u32 %v600, 7
          %v602 = vsub.s32 %v599, %v601
          %v603 = vrot.slane %v587, %v602
          %v605 = vunpack.c.l.s4 1966171168
          %v606 = vunpack.c.0.s8 %v605
          %v607 = vlaneseq
          %v608 = vshrl.u32 %v607, 7
          %v609 = vsub.s32 %v606, %v608
          %v610 = vrot.slane %v588, %v609
          %v612 = vunpack.c.l.s4 1966171168
          %v613 = vunpack.c.0.s8 %v612
          %v614 = vlaneseq
          %v615 = vshrl.u32 %v614, 7
          %v616 = vsub.s32 %v613, %v615
          %v617 = vrot.slane %v589, %v616
          %v618 = vcombine.low %v596, %v603
          %v619 = vcombine.low %v610, %v617
          %v621 = vunpack.c.l.s4 1966171168
          %v622 = vunpack.c.0.s8 %v621
          %v623 = vlaneseq
          %v624 = vshrl.u32 %v623, 7
          %v625 = vsub.s32 %v622, %v624
          %v626 = vrot.slane %v618, %v625
          %v628 = vunpack.c.l.s4 1966171168
          %v629 = vunpack.c.0.s8 %v628
          %v630 = vlaneseq
          %v631 = vshrl.u32 %v630, 7
          %v632 = vsub.s32 %v629, %v631
          %v633 = vrot.slane %v619, %v632
          %v634 = vcombine.low %v626, %v633
          %635 = vset.pattern.permute.xlu0 0
          %636 = vperm.xlu0 %635, %v634
          %v637 = vpop.permute.xlu0 %636
          %v638 = vlaneseq
          %v639 = vshrl.u32 %v638, 7
          %v640 = vsub.s32 %v413, %v639
          %v641 = vrot.slane %v637, %v640
          %v643 = vunpack.c.l.s4 1966171168
          %v644 = vunpack.c.0.s8 %v643
          %v645 = vlaneseq
          %v646 = vshrl.u32 %v645, 7
          %v647 = vsub.s32 %v644, %v646
          %v648 = vrot.slane %v641, %v647
          %v650 = vunpack.c.l.s4 1966171168
          %v651 = vunpack.c.0.s8 %v650
          %v652 = vlaneseq
          %v653 = vshrl.u32 %v652, 7
          %v654 = vsub.s32 %v651, %v653
          %v655 = vrot.slane %v648, %v654
          %v657 = vrcp.pop %v655
          %v658 = vmul.f32 %v422, %v657
          %vm659 = vcmask 64512
          %v661 = vsel %vm659, %v658, 0
          %663 = vmatprep.subr.mxu0 0.0
          %664 = vmatpush1.msra.mxu0 %v441
          %665 = vmatprep.subr.mxu0 0.0
          %666 = vmatpush1.msra.mxu0 0.0
          %667 = vmatprep.subr.mxu0 0.0
          %668 = vmatpush1.msra.mxu0 0.0
          %669 = vmatprep.subr.mxu0 0.0
          %670 = vmatpush1.msra.mxu0 0.0
          %671 = vmatprep.subr.mxu0 0.0
          %672 = vmatpush1.msra.mxu0 0.0
          %673 = vmatprep.subr.mxu0 0.0
          %674 = vmatpush1.msra.mxu0 0.0
          %675 = vmatprep.subr.mxu0 0.0
          %676 = vmatpush1.msra.mxu0 0.0
          %677 = vmatprep.subr.mxu0 0.0
          %678 = vmatpush1.msra.mxu0 0.0
          %679 = vmatprep.subr.mxu0 0.0
          %680 = vmatpush1.msra.mxu0 0.0
          %681 = vmatprep.subr.mxu0 0.0
          %682 = vmatpush1.msra.mxu0 0.0
          %683 = vmatprep.subr.mxu0 0.0
          %684 = vmatpush1.msra.mxu0 0.0
          %685 = vmatprep.subr.mxu0 0.0
          %686 = vmatpush1.msra.mxu0 0.0
          %687 = vmatprep.subr.mxu0 0.0
          %688 = vmatpush1.msra.mxu0 0.0
          %689 = vmatprep.subr.mxu0 0.0
          %690 = vmatpush1.msra.mxu0 0.0
          %691 = vmatprep.subr.mxu0 0.0
          %692 = vmatpush1.msra.mxu0 0.0
          %693 = vmatprep.subr.mxu0 0.0
          %694 = vmatpush1.msra.mxu0 0.0
          %695 = vmatprep.subr.mxu0 0.0
          %696 = vmatpush1.msra.mxu0 0.0
          %697 = vmatprep.subr.mxu0 0.0
          %698 = vmatpush1.msra.mxu0 0.0
          %699 = vmatprep.subr.mxu0 0.0
          %700 = vmatpush1.msra.mxu0 0.0
          %701 = vmatprep.subr.mxu0 0.0
          %702 = vmatpush1.msra.mxu0 0.0
          %703 = vmatprep.subr.mxu0 0.0
          %704 = vmatpush1.msra.mxu0 0.0
          %705 = vmatprep.subr.mxu0 0.0
          %706 = vmatpush1.msra.mxu0 0.0
          %707 = vmatprep.subr.mxu0 0.0
          %708 = vmatpush1.msra.mxu0 0.0
          %709 = vmatprep.subr.mxu0 0.0
          %710 = vmatpush1.msra.mxu0 0.0
          %711 = vmatprep.subr.mxu0 0.0
          %712 = vmatpush1.msra.mxu0 0.0
          %713 = vmatprep.subr.mxu0 0.0
          %714 = vmatpush1.msra.mxu0 0.0
          %715 = vmatprep.subr.mxu0 0.0
          %716 = vmatpush1.msra.mxu0 0.0
          %717 = vmatprep.subr.mxu0 0.0
          %718 = vmatpush1.msra.mxu0 0.0
          %719 = vmatprep.subr.mxu0 0.0
          %720 = vmatpush1.msra.mxu0 0.0
          %721 = vmatprep.subr.mxu0 0.0
          %722 = vmatpush1.msra.mxu0 0.0
          %723 = vmatprep.subr.mxu0 0.0
          %724 = vmatpush1.msra.mxu0 0.0
          %725 = vmatprep.subr.mxu0 0.0
          %726 = vmatpush1.msra.mxu0 0.0
          %727 = vmatprep.mubr.f32.mxu0 0.0
          %728 = vmatmul.mubr.f32.gmra.mrb[0].mxu0 %v661
          %v729 = vpop.f32.mrb[0].mxu0
          %v730 = vadd.f32 0.0, %v729
          %v731 = vpop.f32.mrb[0].mxu0
          %732 = vdwg.mxu0
          %v733 = vmax.f32 %v730, 1e-38
          %v734 = vlog2.pop %v733
          %v735 = vmul.f32 %v734, 0.6931472
          %v736 = vsub.f32 -2.0794415, %v735
          %v737 = vadd.f32 %v736, %v429
          %v738 = vsel %vm414, %v737, 0.0
          %v739 = vlaneseq
          %v740 = vshrl.u32 %v739, 7
          %v741 = vsub.s32 0, %v740
          %v742 = vrot.slane %v551, %v741
          %744 = vbcast.lane.b32.xlu0 %v742, 256
          %v745 = vpop.permute.xlu0 %744
          %v746 = vadd.f32 %v430, %v745
          %v747 = vsub.f32 %v738, %v429
          %v748 = vlaneseq
          %v749 = vshrl.u32 %v748, 7
          %v750 = vsub.s32 0, %v749
          %v751 = vrot.slane %v747, %v750
          %v752 = vadd.f32 %v746, %v751
          %v753 = vand.u32 2147483647, %v551
          %vm754 = vcmask 57344
          %v755 = vsel %vm754, %v753, 0.0
          %756 = vadd.xlane.f32.xlu0 %v755
          %v757 = vpop.xlane.xlu0 %756
          %v758 = vrot.slane %v757, 4
          %v759 = vadd.f32 %v757, %v758
          %v760 = vrot.slane %v759, 2
          %v761 = vadd.f32 %v759, %v760
          %v762 = vrot.slane %v761, 1
          %v763 = vadd.f32 %v761, %v762
          %s764 = vtos %v763
          %s765 = smul.f32 %s764, 0.1
          %s766 = sadd.s32 %s426, 1
        $region45: #{tpu_custom_call.1} parent=31 // loop_footer
          _
        $region46: #{tpu_custom_call.1} parent=31 // loop_footer_branch
          %425 = sbr.rel target = $region42
        $region47: #{tpu_custom_call.1} parent=31 // loop_exit
          _
        %v767 = vlaneseq
        %v768 = vshrl.u32 %v767, 7
        %v769 = vsub.s32 0, %v768
        %v770 = vrot.slane %v428, %v769
        %772 = vbcast.lane.b32.xlu0 %v770, 256
        %v773 = vpop.permute.xlu0 %772
        %v774 = vadd.f32 %v421, %v773
        %v775 = vlaneseq
        %v776 = vshrl.u32 %v775, 7
        %v777 = vsub.s32 0, %v776
        %v778 = vrot.slane %v429, %v777
        %v779 = vadd.f32 %v774, %v778
        %v780 = vmul.f32 %v779, 1.442695
        %v781 = vpow.pop %v780
        %v782 = vmul.f32 %v421, -0.1
        %v783 = vmul.f32 %v781, %v782
        %v784 = vrot.slane %v783, 4
        %v785 = vadd.f32 %v783, %v784
        %v786 = vrot.slane %v785, 2
        %v787 = vadd.f32 %v785, %v786
        %v788 = vrot.slane %v787, 1
        %v789 = vadd.f32 %v787, %v788
        %790 = vst [vmem:[%s293] sm:$0x1] %v789
        %791 = vst [vmem:[%s300] sm:$0xff] %v781
        %792 = vst [vmem:[%s307] sm:$0xff] %v782
        %s793 = sand.u32 %s115, 1
        %s794 = scalar_lea.sflag [#allocation4], %s793
        %s795 = sand.u32 %s115, 1
        %s796 = scalar_lea.vmem [#allocation7], %s795
        %s797 = sand.u32 %s29, 1
        %s798 = scalar_lea.sflag [#allocation9], %s797
        %s799 = sand.u32 %s141, 1
        %s800 = smul.addr %s799, 8
        %s801 = scalar_lea.vmem [#allocation8], %s800
        %s802 = sand.u32 %s29, 1
        %s803 = scalar_lea.sflag [#allocation9], %s802
        %s804 = sand.u32 %s167, 1
        %s805 = smul.addr %s804, 8
        %s806 = scalar_lea.vmem [#allocation10], %s805
        // Predicated region
        $region48: #{tpu_custom_call.1} parent=31 // pred_check
          %p807 = pneg %p125
        $region49: #{tpu_custom_call.1} parent=31 // pred_check_branch
          %809 = sbr.rel (%p807) target = $region51
        $region50: #{tpu_custom_call.1} parent=31 // pred_region
          %s811 = ssub.s32 16, 16
          %812 = vsyncadd %s794, %s811
          %s813 = smul.addr %s29, 16
          %s814 = scalar_lea.hbm %s3, %s813
          %s816 = sshll.u32 %s796, 4
          %s817 = int_to_ptr.vmem [resolvable:$true] %s816
          %819 = dma.vmem_to_hbm [thread:$0]  %s817, 16, %s814, %s794
        $region51: #{tpu_custom_call.1} parent=31 // pred_fallthru
          _
        // Predicated region
        $region52: #{tpu_custom_call.1} parent=31 // pred_check
          %p820 = pneg %p151
        $region53: #{tpu_custom_call.1} parent=31 // pred_check_branch
          %822 = sbr.rel (%p820) target = $region55
        $region54: #{tpu_custom_call.1} parent=31 // pred_region
          %s824 = ssub.s32 128, 128
          %825 = vsyncadd %s798, %s824
          %s826 = smul.addr %s29, 128
          %s827 = scalar_lea.hbm %s4, %s826
          %s829 = sshll.u32 %s801, 4
          %s830 = int_to_ptr.vmem [resolvable:$true] %s829
          %832 = dma.vmem_to_hbm [thread:$0]  %s830, 128, %s827, %s798
        $region55: #{tpu_custom_call.1} parent=31 // pred_fallthru
          _
        // Predicated region
        $region56: #{tpu_custom_call.1} parent=31 // pred_check
          %p833 = pneg %p177
        $region57: #{tpu_custom_call.1} parent=31 // pred_check_branch
          %835 = sbr.rel (%p833) target = $region59
        $region58: #{tpu_custom_call.1} parent=31 // pred_region
          %s837 = ssub.s32 128, 128
          %838 = vsyncadd %s803, %s837
          %s839 = smul.addr %s29, 128
          %s840 = scalar_lea.hbm %s5, %s839
          %s842 = sshll.u32 %s806, 4
          %s843 = int_to_ptr.vmem [resolvable:$true] %s842
          %845 = dma.vmem_to_hbm [thread:$0]  %s843, 128, %s840, %s803
        $region59: #{tpu_custom_call.1} parent=31 // pred_fallthru
          _
      $region32: #{tpu_custom_call.1} parent=5 // pred_fallthru
        _
      %p846 = scmp.le.s32.totalorder 2, %s24
      // Predicated region
      $region60: #{tpu_custom_call.1} parent=5 // pred_check
        %p847 = pneg %p846
      $region61: #{tpu_custom_call.1} parent=5 // pred_check_branch
        %849 = sbr.rel (%p847) target = $region63
      $region62: #{tpu_custom_call.1} parent=5 // pred_region
        %s850 = ssub.s32 %s24, 2
        // Predicated region
        $region64: #{tpu_custom_call.1} parent=62 // pred_check
          %p851 = pneg %p131
        $region65: #{tpu_custom_call.1} parent=62 // pred_check_branch
          %853 = sbr.rel (%p851) target = $region67
        $region66: #{tpu_custom_call.1} parent=62 // pred_region
          %s854 = sand.u32 %s116, 1
          %s855 = scalar_lea.sflag [#allocation4], %s854
          %s856 = sand.u32 %s116, 1
          %s857 = scalar_lea.vmem [#allocation7], %s856
          %858 = dma.done %s855, 16
        $region67: #{tpu_custom_call.1} parent=62 // pred_fallthru
          _
        // Predicated region
        $region68: #{tpu_custom_call.1} parent=62 // pred_check
          %p859 = pneg %p157
        $region69: #{tpu_custom_call.1} parent=62 // pred_check_branch
          %861 = sbr.rel (%p859) target = $region71
        $region70: #{tpu_custom_call.1} parent=62 // pred_region
          %s862 = sand.u32 %s30, 1
          %s863 = scalar_lea.sflag [#allocation9], %s862
          %s864 = sand.u32 %s142, 1
          %s865 = smul.addr %s864, 8
          %s866 = scalar_lea.vmem [#allocation8], %s865
          %867 = dma.done %s863, 128
        $region71: #{tpu_custom_call.1} parent=62 // pred_fallthru
          _
        // Predicated region
        $region72: #{tpu_custom_call.1} parent=62 // pred_check
          %p868 = pneg %p183
        $region73: #{tpu_custom_call.1} parent=62 // pred_check_branch
          %870 = sbr.rel (%p868) target = $region75
        $region74: #{tpu_custom_call.1} parent=62 // pred_region
          %s871 = sand.u32 %s30, 1
          %s872 = scalar_lea.sflag [#allocation9], %s871
          %s873 = sand.u32 %s168, 1
          %s874 = smul.addr %s873, 8
          %s875 = scalar_lea.vmem [#allocation10], %s874
          %876 = dma.done %s872, 128
        $region75: #{tpu_custom_call.1} parent=62 // pred_fallthru
          _
      $region63: #{tpu_custom_call.1} parent=5 // pred_fallthru
        _
    $region6: #{tpu_custom_call.1} parent=1 // loop_footer
      %s28 = sadd.s32 1, %s24
    $region7: #{tpu_custom_call.1} parent=1 // loop_footer_branch
      %23 = sbr.rel target = $region3
    $region8: #{tpu_custom_call.1} parent=1 // loop_exit
      _
    %877 = vsyncpa [#allocation3], 1
    %s878 = scalar_lea.sflag [#allocation3], 1
    %879 = vsyncpa %s878, 1
    %880 = vsyncpa [#allocation6], 1
    %s881 = scalar_lea.sflag [#allocation6], 1
    %882 = vsyncpa %s881, 1
    %883 = vsyncpa [#allocation4], 1
    %s884 = scalar_lea.sflag [#allocation4], 1
    %885 = vsyncpa %s884, 1
    %886 = vsyncpa [#allocation9], 1
    %s887 = scalar_lea.sflag [#allocation9], 1
    %888 = vsyncpa %s887, 1

</llo_original>
